<compile_context>
chip_gen: v7x
topology: tpu7x:2x2x1
jax: 0.10.0
libtpu: 0.0.40
codegen_flags: <defaults>
</compile_context>

<pallas_src>
import jax
import jax.numpy as jnp
from jax.experimental import pallas as pl
from jax.experimental.pallas import tpu as pltpu


def resblock_kernel(
    x_ref,                       # (1, H, W*C1)    f32, lane-dense
    w1_ref,                      # (W*C1, W*C2)    bf16  block-diag 1x1 conv
    s1_ref, b1_ref,              # (1, W*C2)       f32   folded BN1 (tiled)
    w2_ref,                      # (3, W*C2, W*C3) bf16  banded 3x3 conv
    s2_ref, b2_ref,              # (1, W*C3)       f32   folded BN2 (tiled)
    w3_ref,                      # (W*C3, W*C4)    bf16  block-diag 1x1 conv
    s3_ref, b3_ref,              # (1, W*C4)       f32   folded BN3 (tiled)
    y_ref,                       # (1, H, W*C4)    f32, lane-dense
):
    H = x_ref.shape[1]
    wc2 = w1_ref.shape[1]

    x = x_ref[0]                                       # (H, W*C1) f32
    xb = x.astype(jnp.bfloat16)

    # ---- conv1 (1x1) + folded BN + ReLU: one lane-dense bf16 matmul ----
    h1 = jnp.dot(xb, w1_ref[...], preferred_element_type=jnp.float32)
    h1 = jnp.maximum(h1 * s1_ref[...] + b1_ref[...], 0.0)
    h1b = h1.astype(jnp.bfloat16)

    # ---- conv2 (3x3, pad=1) + folded BN + ReLU ----
    # Column taps/padding live in the banded weight matrices; row padding is
    # just two zero halo rows.  Three K = W*C2 matmuls (one per kernel row).
    zrow = jnp.zeros((1, wc2), jnp.bfloat16)
    h1p = jnp.concatenate([zrow, h1b, zrow], axis=0)   # (H+2, W*C2)
    acc = jnp.dot(h1p[0:H], w2_ref[0], preferred_element_type=jnp.float32)
    acc = acc + jnp.dot(h1p[1:H + 1], w2_ref[1],
                        preferred_element_type=jnp.float32)
    acc = acc + jnp.dot(h1p[2:H + 2], w2_ref[2],
                        preferred_element_type=jnp.float32)
    h2 = jnp.maximum(acc * s2_ref[...] + b2_ref[...], 0.0)
    h2b = h2.astype(jnp.bfloat16)

    # ---- conv3 (1x1) + folded BN (no ReLU) ----
    h3 = jnp.dot(h2b, w3_ref[...], preferred_element_type=jnp.float32)
    h3 = h3 * s3_ref[...] + b3_ref[...]

    # ---- residual add + final ReLU (f32), lane-dense store ----
    y_ref[0] = jnp.maximum(x + h3, 0.0)


# ----------------------------- parameter prep -------------------------------

def _fold_bn(gamma, beta, mean, var, eps=1e-5):
    scale = gamma / jnp.sqrt(var + eps)
    bias = beta - mean * scale
    return scale.astype(jnp.float32), bias.astype(jnp.float32)


def _block_diag(w, reps):
    """Tile a (Cin, Cout) matrix into a (reps*Cin, reps*Cout) block diagonal."""
    cin, cout = w.shape
    m = jnp.zeros((reps * cin, reps * cout), jnp.float32)
    for j in range(reps):
        m = m.at[j * cin:(j + 1) * cin, j * cout:(j + 1) * cout].set(w)
    return m


def _banded_conv3x3(w2_khwio, width):
    """(3, 3, C2, C3) -> (3, W*C2, W*C3) banded matrices.

    M[kh, j*C2+ci, j2*C3+co] = w2[kh, kw, ci, co] for j = j2 + kw - 1 when in
    range; out-of-range columns (conv zero padding along W) are simply absent.
    """
    _, _, c2, c3 = w2_khwio.shape
    mats = []
    for kh in range(3):
        m = jnp.zeros((width * c2, width * c3), jnp.float32)
        for kw in range(3):
            for j2 in range(width):
                j = j2 + kw - 1
                if 0 <= j < width:
                    m = m.at[j * c2:(j + 1) * c2,
                             j2 * c3:(j2 + 1) * c3].set(w2_khwio[kh, kw])
        mats.append(m)
    return jnp.stack(mats, axis=0)


def make_params(key, dim1, dim2, dim3, dim4, width):
    ks = jax.random.split(key, 12)
    # Conv weights in PyTorch layout (out, in, kh, kw).
    w1_t = jax.random.normal(ks[0], (dim2, dim1, 1, 1), jnp.float32) * 0.1
    w2_t = jax.random.normal(ks[1], (dim3, dim2, 3, 3), jnp.float32) * 0.1
    w3_t = jax.random.normal(ks[2], (dim4, dim3, 1, 1), jnp.float32) * 0.1

    def bn(kg, kb, km, kv, c):
        gamma = 1.0 + 0.1 * jax.random.normal(kg, (c,), jnp.float32)
        beta = 0.1 * jax.random.normal(kb, (c,), jnp.float32)
        mean = 0.1 * jax.random.normal(km, (c,), jnp.float32)
        var = 1.0 + 0.1 * jax.random.uniform(kv, (c,), jnp.float32)
        return gamma, beta, mean, var

    bn1 = bn(ks[3], ks[4], ks[5], ks[6], dim2)
    bn2 = bn(ks[7], ks[8], ks[9], ks[10], dim3)
    bn3 = bn(*jax.random.split(ks[11], 4), dim4)

    w1 = jnp.transpose(w1_t[:, :, 0, 0], (1, 0))       # (C1, C2)
    w2 = jnp.transpose(w2_t, (2, 3, 1, 0))             # (kh, kw, cin, cout)
    w3 = jnp.transpose(w3_t[:, :, 0, 0], (1, 0))       # (C3, C4)

    s1, b1 = _fold_bn(*bn1)
    s2, b2 = _fold_bn(*bn2)
    s3, b3 = _fold_bn(*bn3)

    params = (
        _block_diag(w1, width).astype(jnp.bfloat16),
        jnp.tile(s1, width)[None, :], jnp.tile(b1, width)[None, :],
        _banded_conv3x3(w2, width).astype(jnp.bfloat16),
        jnp.tile(s2, width)[None, :], jnp.tile(b2, width)[None, :],
        _block_diag(w3, width).astype(jnp.bfloat16),
        jnp.tile(s3, width)[None, :], jnp.tile(b3, width)[None, :],
    )
    torch_params = (w1_t, w2_t, w3_t, bn1, bn2, bn3)
    return params, torch_params


# --------------------------------- wrapper ----------------------------------

def res_block_forward(x_nchw, params):
    (w1b, s1, b1, w2b, s2, b2, w3b, s3, b3) = params
    n, c1, h, w = x_nchw.shape
    wc1, wc2 = w1b.shape
    wc3, wc4 = w3b.shape
    assert wc1 == w * c1, "lane-dense layout requires W*C1 to match weights"
    c4 = wc4 // w

    # NCHW -> lane-dense (N, H, W*C1).
    x = jnp.transpose(x_nchw, (0, 2, 3, 1)).reshape(n, h, w * c1)
    x = x.astype(jnp.float32)

    resident2 = lambda shp: pl.BlockSpec(shp, lambda i: (0, 0))
    resident3 = lambda shp: pl.BlockSpec(shp, lambda i: (0, 0, 0))

    y = pl.pallas_call(
        resblock_kernel,
        out_shape=jax.ShapeDtypeStruct((n, h, wc4), jnp.float32),
        grid_spec=pltpu.PrefetchScalarGridSpec(
            num_scalar_prefetch=0,
            grid=(n,),
            in_specs=[
                pl.BlockSpec((1, h, wc1), lambda i: (i, 0, 0)),   # x tile
                resident2(w1b.shape),
                resident2(s1.shape), resident2(b1.shape),
                resident3(w2b.shape),
                resident2(s2.shape), resident2(b2.shape),
                resident2(w3b.shape),
                resident2(s3.shape), resident2(b3.shape),
            ],
            out_specs=pl.BlockSpec((1, h, wc4), lambda i: (i, 0, 0)),
        ),
        compiler_params=pltpu.CompilerParams(
            dimension_semantics=("parallel",)),
    )(x, w1b, s1, b1, w2b, s2, b2, w3b, s3, b3)

    # lane-dense (N, H, W*C4) -> NCHW.
    return jnp.transpose(y.reshape(n, h, w, c4), (0, 3, 1, 2))


# ------------------------------- pure-JAX ref --------------------------------

def res_block_reference(x_nchw, torch_params):
    """Pure-JAX reference (lax.conv) matching the PyTorch module in eval mode."""
    w1_t, w2_t, w3_t, bn1, bn2, bn3 = torch_params

    def conv(x, w, pad):
        return jax.lax.conv_general_dilated(
            x, w, window_strides=(1, 1), padding=[(pad, pad), (pad, pad)],
            dimension_numbers=("NCHW", "OIHW", "NCHW"))

    def bn_apply(x, bn, eps=1e-5):
        gamma, beta, mean, var = bn
        sc = (gamma / jnp.sqrt(var + eps))[None, :, None, None]
        bs = (beta - mean * gamma / jnp.sqrt(var + eps))[None, :, None, None]
        return x * sc + bs

    h = jax.nn.relu(bn_apply(conv(x_nchw, w1_t, 0), bn1))
    h = jax.nn.relu(bn_apply(conv(h, w2_t, 1), bn2))
    h = bn_apply(conv(h, w3_t, 0), bn3)
    return jax.nn.relu(x_nchw + h)


if __name__ == "__main__":
    # dims: dim1 == dim4 (required by the residual add), small synthetic sizes.
    dim1, dim2, dim3, dim4 = 8, 16, 16, 8
    N, H, W = 2, 16, 16            # W*dim1 = W*dim4 = 128 lanes, W*dim2 = 256

    key = jax.random.PRNGKey(0)
    kx, kp = jax.random.split(key)
    x = jax.random.normal(kx, (N, dim1, H, W), jnp.float32)   # NCHW like PyTorch

    params, torch_params = make_params(kp, dim1, dim2, dim3, dim4, W)

    y = jax.block_until_ready(res_block_forward(x, params))
    y_ref = res_block_reference(x, torch_params)

    assert y.shape == (N, dim4, H, W)
    # Tolerance loosened vs f32-only version because matmul operands are bf16
    # (accumulation is f32).
    err = float(jnp.max(jnp.abs(y - y_ref)))
    assert err < 5e-2, f"mismatch vs pure-JAX reference: {err}"

    print("KERNEL_OK")
</pallas_src>

<mosaic_0001>
module attributes {stable_mosaic.version = 11 : i64} {
  func.func @resblock_kernel(%arg0: i32, %arg1: memref<1x16x128xf32, #tpu.memory_space<vmem>>, %arg2: memref<128x256xbf16, #tpu.memory_space<vmem>>, %arg3: memref<1x256xf32, #tpu.memory_space<vmem>>, %arg4: memref<1x256xf32, #tpu.memory_space<vmem>>, %arg5: memref<3x256x256xbf16, #tpu.memory_space<vmem>>, %arg6: memref<1x256xf32, #tpu.memory_space<vmem>>, %arg7: memref<1x256xf32, #tpu.memory_space<vmem>>, %arg8: memref<256x128xbf16, #tpu.memory_space<vmem>>, %arg9: memref<1x128xf32, #tpu.memory_space<vmem>>, %arg10: memref<1x128xf32, #tpu.memory_space<vmem>>, %arg11: memref<1x16x128xf32, #tpu.memory_space<vmem>>) attributes {dimension_semantics = [#tpu.dimension_semantics<parallel>], iteration_bounds = array<i64: 2>, scalar_prefetch = 0 : i64, scratch_operands = 0 : i64, tpu.core_type = #tpu.core_type<tc>, window_params = [{transform_indices = @transform_0, window_bounds = array<i64: 1, 16, 128>}, {pipeline_mode = #tpu.pipeline_mode<synchronous>, transform_indices = @transform_1, window_bounds = array<i64: 128, 256>}, {pipeline_mode = #tpu.pipeline_mode<synchronous>, transform_indices = @transform_2, window_bounds = array<i64: 1, 256>}, {pipeline_mode = #tpu.pipeline_mode<synchronous>, transform_indices = @transform_3, window_bounds = array<i64: 1, 256>}, {pipeline_mode = #tpu.pipeline_mode<synchronous>, transform_indices = @transform_4, window_bounds = array<i64: 3, 256, 256>}, {pipeline_mode = #tpu.pipeline_mode<synchronous>, transform_indices = @transform_5, window_bounds = array<i64: 1, 256>}, {pipeline_mode = #tpu.pipeline_mode<synchronous>, transform_indices = @transform_6, window_bounds = array<i64: 1, 256>}, {pipeline_mode = #tpu.pipeline_mode<synchronous>, transform_indices = @transform_7, window_bounds = array<i64: 256, 128>}, {pipeline_mode = #tpu.pipeline_mode<synchronous>, transform_indices = @transform_8, window_bounds = array<i64: 1, 128>}, {pipeline_mode = #tpu.pipeline_mode<synchronous>, transform_indices = @transform_9, window_bounds = array<i64: 1, 128>}, {transform_indices = @transform_10, window_bounds = array<i64: 1, 16, 128>}]} {
    %c0 = arith.constant 0 : index
    %c0_0 = arith.constant 0 : index
    %c0_1 = arith.constant 0 : index
    %0 = vector.load %arg1[%c0, %c0_0, %c0_1] : memref<1x16x128xf32, #tpu.memory_space<vmem>>, vector<1x16x128xf32>
    %1 = vector.shape_cast %0 : vector<1x16x128xf32> to vector<16x128xf32>
    %2 = arith.truncf %1 : vector<16x128xf32> to vector<16x128xbf16>
    %c0_2 = arith.constant 0 : index
    %c0_3 = arith.constant 0 : index
    %3 = vector.load %arg2[%c0_2, %c0_3] : memref<128x256xbf16, #tpu.memory_space<vmem>>, vector<128x256xbf16>
    %cst = arith.constant dense<0.000000e+00> : vector<16x256xf32>
    %4 = tpu.matmul %2, %3, %cst {dimension_numbers = #tpu.dot_dimension_numbers<[1], [0], [0], [1], [0, 0, 1, 1], [], []>} : vector<16x128xbf16>, vector<128x256xbf16>, vector<16x256xf32> -> vector<16x256xf32>
    %c0_4 = arith.constant 0 : index
    %c0_5 = arith.constant 0 : index
    %5 = vector.load %arg3[%c0_4, %c0_5] : memref<1x256xf32, #tpu.memory_space<vmem>>, vector<1x256xf32>
    %6 = vector.broadcast %5 : vector<1x256xf32> to vector<16x256xf32>
    %7 = arith.mulf %4, %6 : vector<16x256xf32>
    %c0_6 = arith.constant 0 : index
    %c0_7 = arith.constant 0 : index
    %8 = vector.load %arg4[%c0_6, %c0_7] : memref<1x256xf32, #tpu.memory_space<vmem>>, vector<1x256xf32>
    %9 = vector.broadcast %8 : vector<1x256xf32> to vector<16x256xf32>
    %10 = arith.addf %7, %9 : vector<16x256xf32>
    %cst_8 = arith.constant 0.000000e+00 : f32
    %11 = vector.broadcast %cst_8 : f32 to vector<16x256xf32>
    %12 = arith.maximumf %10, %11 : vector<16x256xf32>
    %13 = arith.truncf %12 : vector<16x256xf32> to vector<16x256xbf16>
    %cst_9 = arith.constant 0.000000e+00 : bf16
    %14 = vector.broadcast %cst_9 : bf16 to vector<1x256xbf16>
    %15 = tpu.concatenate %14, %13, %14 in 0 : vector<1x256xbf16>, vector<16x256xbf16>, vector<1x256xbf16> -> vector<18x256xbf16>
    %16 = vector.extract_strided_slice %15 {offsets = [0, 0], sizes = [16, 256], strides = [1, 1]} : vector<18x256xbf16> to vector<16x256xbf16>
    %c0_10 = arith.constant 0 : index
    %c0_11 = arith.constant 0 : index
    %c0_12 = arith.constant 0 : index
    %17 = vector.load %arg5[%c0_10, %c0_11, %c0_12] : memref<3x256x256xbf16, #tpu.memory_space<vmem>>, vector<1x256x256xbf16>
    %18 = vector.shape_cast %17 : vector<1x256x256xbf16> to vector<256x256xbf16>
    %cst_13 = arith.constant dense<0.000000e+00> : vector<16x256xf32>
    %19 = tpu.matmul %16, %18, %cst_13 {dimension_numbers = #tpu.dot_dimension_numbers<[1], [0], [0], [1], [0, 0, 1, 1], [], []>} : vector<16x256xbf16>, vector<256x256xbf16>, vector<16x256xf32> -> vector<16x256xf32>
    %20 = vector.extract_strided_slice %15 {offsets = [1, 0], sizes = [16, 256], strides = [1, 1]} : vector<18x256xbf16> to vector<16x256xbf16>
    %c1 = arith.constant 1 : index
    %c0_14 = arith.constant 0 : index
    %c0_15 = arith.constant 0 : index
    %21 = vector.load %arg5[%c1, %c0_14, %c0_15] : memref<3x256x256xbf16, #tpu.memory_space<vmem>>, vector<1x256x256xbf16>
    %22 = vector.shape_cast %21 : vector<1x256x256xbf16> to vector<256x256xbf16>
    %cst_16 = arith.constant dense<0.000000e+00> : vector<16x256xf32>
    %23 = tpu.matmul %20, %22, %cst_16 {dimension_numbers = #tpu.dot_dimension_numbers<[1], [0], [0], [1], [0, 0, 1, 1], [], []>} : vector<16x256xbf16>, vector<256x256xbf16>, vector<16x256xf32> -> vector<16x256xf32>
    %24 = arith.addf %19, %23 : vector<16x256xf32>
    %25 = vector.extract_strided_slice %15 {offsets = [2, 0], sizes = [16, 256], strides = [1, 1]} : vector<18x256xbf16> to vector<16x256xbf16>
    %c2 = arith.constant 2 : index
    %c0_17 = arith.constant 0 : index
    %c0_18 = arith.constant 0 : index
    %26 = vector.load %arg5[%c2, %c0_17, %c0_18] : memref<3x256x256xbf16, #tpu.memory_space<vmem>>, vector<1x256x256xbf16>
    %27 = vector.shape_cast %26 : vector<1x256x256xbf16> to vector<256x256xbf16>
    %cst_19 = arith.constant dense<0.000000e+00> : vector<16x256xf32>
    %28 = tpu.matmul %25, %27, %cst_19 {dimension_numbers = #tpu.dot_dimension_numbers<[1], [0], [0], [1], [0, 0, 1, 1], [], []>} : vector<16x256xbf16>, vector<256x256xbf16>, vector<16x256xf32> -> vector<16x256xf32>
    %29 = arith.addf %24, %28 : vector<16x256xf32>
    %c0_20 = arith.constant 0 : index
    %c0_21 = arith.constant 0 : index
    %30 = vector.load %arg6[%c0_20, %c0_21] : memref<1x256xf32, #tpu.memory_space<vmem>>, vector<1x256xf32>
    %31 = vector.broadcast %30 : vector<1x256xf32> to vector<16x256xf32>
    %32 = arith.mulf %29, %31 : vector<16x256xf32>
    %c0_22 = arith.constant 0 : index
    %c0_23 = arith.constant 0 : index
    %33 = vector.load %arg7[%c0_22, %c0_23] : memref<1x256xf32, #tpu.memory_space<vmem>>, vector<1x256xf32>
    %34 = vector.broadcast %33 : vector<1x256xf32> to vector<16x256xf32>
    %35 = arith.addf %32, %34 : vector<16x256xf32>
    %cst_24 = arith.constant 0.000000e+00 : f32
    %36 = vector.broadcast %cst_24 : f32 to vector<16x256xf32>
    %37 = arith.maximumf %35, %36 : vector<16x256xf32>
    %38 = arith.truncf %37 : vector<16x256xf32> to vector<16x256xbf16>
    %c0_25 = arith.constant 0 : index
    %c0_26 = arith.constant 0 : index
    %39 = vector.load %arg8[%c0_25, %c0_26] : memref<256x128xbf16, #tpu.memory_space<vmem>>, vector<256x128xbf16>
    %cst_27 = arith.constant dense<0.000000e+00> : vector<16x128xf32>
    %40 = tpu.matmul %38, %39, %cst_27 {dimension_numbers = #tpu.dot_dimension_numbers<[1], [0], [0], [1], [0, 0, 1, 1], [], []>} : vector<16x256xbf16>, vector<256x128xbf16>, vector<16x128xf32> -> vector<16x128xf32>
    %c0_28 = arith.constant 0 : index
    %c0_29 = arith.constant 0 : index
    %41 = vector.load %arg9[%c0_28, %c0_29] : memref<1x128xf32, #tpu.memory_space<vmem>>, vector<1x128xf32>
    %42 = vector.broadcast %41 : vector<1x128xf32> to vector<16x128xf32>
    %43 = arith.mulf %40, %42 : vector<16x128xf32>
    %c0_30 = arith.constant 0 : index
    %c0_31 = arith.constant 0 : index
    %44 = vector.load %arg10[%c0_30, %c0_31] : memref<1x128xf32, #tpu.memory_space<vmem>>, vector<1x128xf32>
    %45 = vector.broadcast %44 : vector<1x128xf32> to vector<16x128xf32>
    %46 = arith.addf %43, %45 : vector<16x128xf32>
    %47 = arith.addf %1, %46 : vector<16x128xf32>
    %cst_32 = arith.constant 0.000000e+00 : f32
    %48 = vector.broadcast %cst_32 : f32 to vector<16x128xf32>
    %49 = arith.maximumf %47, %48 : vector<16x128xf32>
    %c0_33 = arith.constant 0 : index
    %c0_34 = arith.constant 0 : index
    %c0_35 = arith.constant 0 : index
    %50 = vector.load %arg11[%c0_33, %c0_34, %c0_35] : memref<1x16x128xf32, #tpu.memory_space<vmem>>, vector<1x16x128xf32>
    %51 = vector.shape_cast %50 : vector<1x16x128xf32> to vector<16x128xf32>
    %52 = vector.shape_cast %49 : vector<16x128xf32> to vector<1x16x128xf32>
    tpu.vector_store %arg11[%c0_33, %c0_34, %c0_35], %52 {strides = array<i32>} : memref<1x16x128xf32, #tpu.memory_space<vmem>>, vector<1x16x128xf32>,
    return
  }
  func.func @transform_0(%arg0: i32) -> (i32, i32, i32) {
    %c0_i32 = arith.constant 0 : i32
    %c0_i32_0 = arith.constant 0 : i32
    %c0_i32_1 = arith.constant 0 : i32
    return %arg0, %c0_i32, %c0_i32_0 : i32, i32, i32
  }
  func.func @transform_1(%arg0: i32) -> (i32, i32) {
    %c0_i32 = arith.constant 0 : i32
    %c0_i32_0 = arith.constant 0 : i32
    %c0_i32_1 = arith.constant 0 : i32
    return %c0_i32, %c0_i32_0 : i32, i32
  }
  func.func @transform_2(%arg0: i32) -> (i32, i32) {
    %c0_i32 = arith.constant 0 : i32
    %c0_i32_0 = arith.constant 0 : i32
    %c0_i32_1 = arith.constant 0 : i32
    return %c0_i32, %c0_i32_0 : i32, i32
  }
  func.func @transform_3(%arg0: i32) -> (i32, i32) {
    %c0_i32 = arith.constant 0 : i32
    %c0_i32_0 = arith.constant 0 : i32
    %c0_i32_1 = arith.constant 0 : i32
    return %c0_i32, %c0_i32_0 : i32, i32
  }
  func.func @transform_4(%arg0: i32) -> (i32, i32, i32) {
    %c0_i32 = arith.constant 0 : i32
    %c0_i32_0 = arith.constant 0 : i32
    %c0_i32_1 = arith.constant 0 : i32
    %c0_i32_2 = arith.constant 0 : i32
    return %c0_i32, %c0_i32_0, %c0_i32_1 : i32, i32, i32
  }
  func.func @transform_5(%arg0: i32) -> (i32, i32) {
    %c0_i32 = arith.constant 0 : i32
    %c0_i32_0 = arith.constant 0 : i32
    %c0_i32_1 = arith.constant 0 : i32
    return %c0_i32, %c0_i32_0 : i32, i32
  }
  func.func @transform_6(%arg0: i32) -> (i32, i32) {
    %c0_i32 = arith.constant 0 : i32
    %c0_i32_0 = arith.constant 0 : i32
    %c0_i32_1 = arith.constant 0 : i32
    return %c0_i32, %c0_i32_0 : i32, i32
  }
  func.func @transform_7(%arg0: i32) -> (i32, i32) {
    %c0_i32 = arith.constant 0 : i32
    %c0_i32_0 = arith.constant 0 : i32
    %c0_i32_1 = arith.constant 0 : i32
    return %c0_i32, %c0_i32_0 : i32, i32
  }
  func.func @transform_8(%arg0: i32) -> (i32, i32) {
    %c0_i32 = arith.constant 0 : i32
    %c0_i32_0 = arith.constant 0 : i32
    %c0_i32_1 = arith.constant 0 : i32
    return %c0_i32, %c0_i32_0 : i32, i32
  }
  func.func @transform_9(%arg0: i32) -> (i32, i32) {
    %c0_i32 = arith.constant 0 : i32
    %c0_i32_0 = arith.constant 0 : i32
    %c0_i32_1 = arith.constant 0 : i32
    return %c0_i32, %c0_i32_0 : i32, i32
  }
  func.func @transform_10(%arg0: i32) -> (i32, i32, i32) {
    %c0_i32 = arith.constant 0 : i32
    %c0_i32_0 = arith.constant 0 : i32
    %c0_i32_1 = arith.constant 0 : i32
    return %arg0, %c0_i32, %c0_i32_0 : i32, i32, i32
  }
}

</mosaic_0001>

<llo_original>
// kernel: tpu_custom_call.1
$region0: #{tpu_custom_call.1}
  #allocation0 [shape = 'u32[]', space=smem, size = 0x4, offset = 0x4, fixed_abs, tag = 'smem constant byte address 0x4 - core index']
  #allocation1 [shape = 'u32[144,128]{1,0:T(1,128)}', space=vmem, size = 0x12000, scoped, tag = 'internal scratch']
  %s0 = inlined_call_operand.hbm [shape: f32[2,16,128], index: 0, kind: input, shape index: {}]
  %s1 = inlined_call_operand.hbm [shape: bf16[128,256], index: 1, kind: input, shape index: {}]
  %s2 = inlined_call_operand.vmem [shape: f32[1,256], index: 2, kind: input, shape index: {}]
  %s3 = inlined_call_operand.vmem [shape: f32[1,256], index: 3, kind: input, shape index: {}]
  %s4 = inlined_call_operand.hbm [shape: bf16[3,256,256], index: 4, kind: input, shape index: {}]
  %s5 = inlined_call_operand.vmem [shape: f32[1,256], index: 5, kind: input, shape index: {}]
  %s6 = inlined_call_operand.vmem [shape: f32[1,256], index: 6, kind: input, shape index: {}]
  %s7 = inlined_call_operand.hbm [shape: bf16[256,128], index: 7, kind: input, shape index: {}]
  %s8 = inlined_call_operand.vmem [shape: f32[1,128], index: 8, kind: input, shape index: {}]
  %s9 = inlined_call_operand.vmem [shape: f32[1,128], index: 9, kind: input, shape index: {}]
  %s10 = inlined_call_operand.hbm [shape: f32[2,16,128], index: 10, kind: output, shape index: {}]
  %s11 = sld [smem:[#allocation0]]
  $region89: #{tpu_custom_call.1} parent=0
    _
  %s13 = ssub.s32 1, %s11
  %s14 = scalar_select 0, %s13, %s11
  $region1: #{tpu_custom_call.1} parent=0
    #allocation2 [shape = 'u8[16384]{0}', space=vmem, size = 0x4000, scoped, tag = 'input window, operand 0']
    #allocation3 [shape = 's32[2]{0}', space=sflag, size = 0x8, scoped, tag = 'scoped memory for tpu_custom_call.1']
    #allocation4 [shape = 's32[2]{0}', space=sflag, size = 0x8, scoped, tag = 'scoped memory for tpu_custom_call.1']
    #allocation5 [shape = 'u8[65536]{0}', space=vmem, size = 0x10000, scoped, tag = 'input window, operand 1, single buffered']
    #allocation6 [shape = 's32[1]{0}', space=sflag, size = 0x4, scoped, tag = 'scoped memory for tpu_custom_call.1']
    #allocation7 [shape = 'u8[393216]{0}', space=vmem, size = 0x60000, scoped, tag = 'input window, operand 4, single buffered']
    #allocation8 [shape = 'u8[65536]{0}', space=vmem, size = 0x10000, scoped, tag = 'input window, operand 7, single buffered']
    #allocation9 [shape = 's32[1]{0}', space=sflag, size = 0x4, scoped, tag = 'scoped memory for tpu_custom_call.1']
    #allocation10 [shape = 'u8[16384]{0}', space=vmem, size = 0x4000, scoped, tag = 'output window, operand 0']
    %15 = vsyncpa [#allocation3], 0
    %s16 = scalar_lea.sflag [#allocation3], 1
    %17 = vsyncpa %s16, 0
    %18 = vsyncpa [#allocation6], 0
    %19 = vsyncpa [#allocation9], 0
    %20 = vsyncpa [#allocation4], 0
    %s21 = scalar_lea.sflag [#allocation4], 1
    %22 = vsyncpa %s21, 0
    loop: start=0, step=1, limit=4
    $region2: #{tpu_custom_call.1} parent=1 // loop_pre_header
      _
    $region3: #{tpu_custom_call.1} parent=1 // loop_header
      %s24 = sphi 0, %s28
      %p25 = scmp.ge.s32.totalorder %s24, 4
      %s34 = sphi 0, %s36
      %s37 = sphi 0, %s34
      %s38 = sphi 0, %s37
      %s54 = sphi 0, %s38
      %s58 = sphi 0, %s58
      %s60 = sphi 0, %s58
      %s61 = sphi 0, %s60
      %s75 = sphi 0, %s61
      %s79 = sphi 0, %s79
      %s81 = sphi 0, %s79
      %s82 = sphi 0, %s81
      %s96 = sphi 0, %s82
      %s100 = sphi 0, %s100
      %s102 = sphi 0, %s100
      %s103 = sphi 0, %s102
      %s117 = sphi 0, %s103
      %s121 = sphi 0, %s121
      %s123 = sphi 0, %s121
      %s124 = sphi 0, %s123
      %s138 = sphi 0, %s124
      %s142 = sphi 0, %s142
      %s144 = sphi 0, %s142
      %s145 = sphi 0, %s144
      %s159 = sphi 0, %s145
      %s163 = sphi 0, %s163
      %s165 = sphi 0, %s163
      %s166 = sphi 0, %s165
      %s180 = sphi 0, %s166
      %s184 = sphi 0, %s184
      %s186 = sphi 0, %s184
      %s187 = sphi 0, %s186
      %s201 = sphi 0, %s187
      %s205 = sphi 0, %s205
      %s207 = sphi 0, %s205
      %s208 = sphi 0, %s207
      %s222 = sphi 0, %s208
      %s226 = sphi 0, %s226
      %s228 = sphi 0, %s226
      %s229 = sphi 0, %s228
      %s243 = sphi 0, %s229
      %s249 = sphi 0, %s251
      %s252 = sphi 0, %s249
      %s253 = sphi 0, %s252
      %s269 = sphi 0, %s253
    $region4: #{tpu_custom_call.1} parent=1 // loop_header_branch
      %27 = sbr.rel (%p25) target = $region8
    $region5: #{tpu_custom_call.1} parent=1 // loop_body
      %s29 = ssub.s32 %s24, 1
      %s30 = ssub.s32 %s24, 2
      %s31 = sadd.s32 %s24, 1
      %s32 = ssub.s32 %s24, %s31
      %p33 = scmp.eq.s32.totalorder %s32, 0
      %s35 = sadd.s32 %s34, 1
      %s36 = scalar_select %p33, %s34, %s35
      %p39 = pneg %p33
      %p40 = scmp.eq.s32.totalorder %s24, 1
      %p41 = por %p39, %p40
      %p42 = scmp.ne.s32.totalorder %s34, %s37
      %p43 = scmp.eq.s32.totalorder %s24, 0
      %p44 = por %p42, %p43
      %p45 = scmp.ne.s32.totalorder %s34, %s37
      %p46 = scmp.eq.s32.totalorder %s29, 1
      %p47 = por %p45, %p46
      %p48 = scmp.ne.s32.totalorder %s37, %s38
      %p49 = scmp.eq.s32.totalorder %s29, 0
      %p50 = por %p48, %p49
      %p51 = scmp.ne.s32.totalorder %s37, %s38
      %p52 = scmp.eq.s32.totalorder %s30, 1
      %p53 = por %p51, %p52
      %p55 = scmp.ne.s32.totalorder %s38, %s54
      %p56 = scmp.eq.s32.totalorder %s30, 0
      %p57 = por %p55, %p56
      %s59 = sadd.s32 %s58, 1
      %p62 = scmp.eq.s32.totalorder %s24, 1
      %p63 = scmp.ne.s32.totalorder %s58, %s60
      %p64 = scmp.eq.s32.totalorder %s24, 0
      %p65 = por %p63, %p64
      %p66 = scmp.ne.s32.totalorder %s58, %s60
      %p67 = scmp.eq.s32.totalorder %s29, 1
      %p68 = por %p66, %p67
      %p69 = scmp.ne.s32.totalorder %s60, %s61
      %p70 = scmp.eq.s32.totalorder %s29, 0
      %p71 = por %p69, %p70
      %p72 = scmp.ne.s32.totalorder %s60, %s61
      %p73 = scmp.eq.s32.totalorder %s30, 1
      %p74 = por %p72, %p73
      %p76 = scmp.ne.s32.totalorder %s61, %s75
      %p77 = scmp.eq.s32.totalorder %s30, 0
      %p78 = por %p76, %p77
      %s80 = sadd.s32 %s79, 1
      %p83 = scmp.eq.s32.totalorder %s24, 1
      %p84 = scmp.ne.s32.totalorder %s79, %s81
      %p85 = scmp.eq.s32.totalorder %s24, 0
      %p86 = por %p84, %p85
      %p87 = scmp.ne.s32.totalorder %s79, %s81
      %p88 = scmp.eq.s32.totalorder %s29, 1
      %p89 = por %p87, %p88
      %p90 = scmp.ne.s32.totalorder %s81, %s82
      %p91 = scmp.eq.s32.totalorder %s29, 0
      %p92 = por %p90, %p91
      %p93 = scmp.ne.s32.totalorder %s81, %s82
      %p94 = scmp.eq.s32.totalorder %s30, 1
      %p95 = por %p93, %p94
      %p97 = scmp.ne.s32.totalorder %s82, %s96
      %p98 = scmp.eq.s32.totalorder %s30, 0
      %p99 = por %p97, %p98
      %s101 = sadd.s32 %s100, 1
      %p104 = scmp.eq.s32.totalorder %s24, 1
      %p105 = scmp.ne.s32.totalorder %s100, %s102
      %p106 = scmp.eq.s32.totalorder %s24, 0
      %p107 = por %p105, %p106
      %p108 = scmp.ne.s32.totalorder %s100, %s102
      %p109 = scmp.eq.s32.totalorder %s29, 1
      %p110 = por %p108, %p109
      %p111 = scmp.ne.s32.totalorder %s102, %s103
      %p112 = scmp.eq.s32.totalorder %s29, 0
      %p113 = por %p111, %p112
      %p114 = scmp.ne.s32.totalorder %s102, %s103
      %p115 = scmp.eq.s32.totalorder %s30, 1
      %p116 = por %p114, %p115
      %p118 = scmp.ne.s32.totalorder %s103, %s117
      %p119 = scmp.eq.s32.totalorder %s30, 0
      %p120 = por %p118, %p119
      %s122 = sadd.s32 %s121, 1
      %p125 = scmp.eq.s32.totalorder %s24, 1
      %p126 = scmp.ne.s32.totalorder %s121, %s123
      %p127 = scmp.eq.s32.totalorder %s24, 0
      %p128 = por %p126, %p127
      %p129 = scmp.ne.s32.totalorder %s121, %s123
      %p130 = scmp.eq.s32.totalorder %s29, 1
      %p131 = por %p129, %p130
      %p132 = scmp.ne.s32.totalorder %s123, %s124
      %p133 = scmp.eq.s32.totalorder %s29, 0
      %p134 = por %p132, %p133
      %p135 = scmp.ne.s32.totalorder %s123, %s124
      %p136 = scmp.eq.s32.totalorder %s30, 1
      %p137 = por %p135, %p136
      %p139 = scmp.ne.s32.totalorder %s124, %s138
      %p140 = scmp.eq.s32.totalorder %s30, 0
      %p141 = por %p139, %p140
      %s143 = sadd.s32 %s142, 1
      %p146 = scmp.eq.s32.totalorder %s24, 1
      %p147 = scmp.ne.s32.totalorder %s142, %s144
      %p148 = scmp.eq.s32.totalorder %s24, 0
      %p149 = por %p147, %p148
      %p150 = scmp.ne.s32.totalorder %s142, %s144
      %p151 = scmp.eq.s32.totalorder %s29, 1
      %p152 = por %p150, %p151
      %p153 = scmp.ne.s32.totalorder %s144, %s145
      %p154 = scmp.eq.s32.totalorder %s29, 0
      %p155 = por %p153, %p154
      %p156 = scmp.ne.s32.totalorder %s144, %s145
      %p157 = scmp.eq.s32.totalorder %s30, 1
      %p158 = por %p156, %p157
      %p160 = scmp.ne.s32.totalorder %s145, %s159
      %p161 = scmp.eq.s32.totalorder %s30, 0
      %p162 = por %p160, %p161
      %s164 = sadd.s32 %s163, 1
      %p167 = scmp.eq.s32.totalorder %s24, 1
      %p168 = scmp.ne.s32.totalorder %s163, %s165
      %p169 = scmp.eq.s32.totalorder %s24, 0
      %p170 = por %p168, %p169
      %p171 = scmp.ne.s32.totalorder %s163, %s165
      %p172 = scmp.eq.s32.totalorder %s29, 1
      %p173 = por %p171, %p172
      %p174 = scmp.ne.s32.totalorder %s165, %s166
      %p175 = scmp.eq.s32.totalorder %s29, 0
      %p176 = por %p174, %p175
      %p177 = scmp.ne.s32.totalorder %s165, %s166
      %p178 = scmp.eq.s32.totalorder %s30, 1
      %p179 = por %p177, %p178
      %p181 = scmp.ne.s32.totalorder %s166, %s180
      %p182 = scmp.eq.s32.totalorder %s30, 0
      %p183 = por %p181, %p182
      %s185 = sadd.s32 %s184, 1
      %p188 = scmp.eq.s32.totalorder %s24, 1
      %p189 = scmp.ne.s32.totalorder %s184, %s186
      %p190 = scmp.eq.s32.totalorder %s24, 0
      %p191 = por %p189, %p190
      %p192 = scmp.ne.s32.totalorder %s184, %s186
      %p193 = scmp.eq.s32.totalorder %s29, 1
      %p194 = por %p192, %p193
      %p195 = scmp.ne.s32.totalorder %s186, %s187
      %p196 = scmp.eq.s32.totalorder %s29, 0
      %p197 = por %p195, %p196
      %p198 = scmp.ne.s32.totalorder %s186, %s187
      %p199 = scmp.eq.s32.totalorder %s30, 1
      %p200 = por %p198, %p199
      %p202 = scmp.ne.s32.totalorder %s187, %s201
      %p203 = scmp.eq.s32.totalorder %s30, 0
      %p204 = por %p202, %p203
      %s206 = sadd.s32 %s205, 1
      %p209 = scmp.eq.s32.totalorder %s24, 1
      %p210 = scmp.ne.s32.totalorder %s205, %s207
      %p211 = scmp.eq.s32.totalorder %s24, 0
      %p212 = por %p210, %p211
      %p213 = scmp.ne.s32.totalorder %s205, %s207
      %p214 = scmp.eq.s32.totalorder %s29, 1
      %p215 = por %p213, %p214
      %p216 = scmp.ne.s32.totalorder %s207, %s208
      %p217 = scmp.eq.s32.totalorder %s29, 0
      %p218 = por %p216, %p217
      %p219 = scmp.ne.s32.totalorder %s207, %s208
      %p220 = scmp.eq.s32.totalorder %s30, 1
      %p221 = por %p219, %p220
      %p223 = scmp.ne.s32.totalorder %s208, %s222
      %p224 = scmp.eq.s32.totalorder %s30, 0
      %p225 = por %p223, %p224
      %s227 = sadd.s32 %s226, 1
      %p230 = scmp.eq.s32.totalorder %s24, 1
      %p231 = scmp.ne.s32.totalorder %s226, %s228
      %p232 = scmp.eq.s32.totalorder %s24, 0
      %p233 = por %p231, %p232
      %p234 = scmp.ne.s32.totalorder %s226, %s228
      %p235 = scmp.eq.s32.totalorder %s29, 1
      %p236 = por %p234, %p235
      %p237 = scmp.ne.s32.totalorder %s228, %s229
      %p238 = scmp.eq.s32.totalorder %s29, 0
      %p239 = por %p237, %p238
      %p240 = scmp.ne.s32.totalorder %s228, %s229
      %p241 = scmp.eq.s32.totalorder %s30, 1
      %p242 = por %p240, %p241
      %p244 = scmp.ne.s32.totalorder %s229, %s243
      %p245 = scmp.eq.s32.totalorder %s30, 0
      %p246 = por %p244, %p245
      %s247 = ssub.s32 %s24, %s31
      %p248 = scmp.eq.s32.totalorder %s247, 0
      %s250 = sadd.s32 %s249, 1
      %s251 = scalar_select %p248, %s249, %s250
      %p254 = pneg %p248
      %p255 = scmp.eq.s32.totalorder %s24, 1
      %p256 = por %p254, %p255
      %p257 = scmp.ne.s32.totalorder %s249, %s252
      %p258 = scmp.eq.s32.totalorder %s24, 0
      %p259 = por %p257, %p258
      %p260 = scmp.ne.s32.totalorder %s249, %s252
      %p261 = scmp.eq.s32.totalorder %s29, 1
      %p262 = por %p260, %p261
      %p263 = scmp.ne.s32.totalorder %s252, %s253
      %p264 = scmp.eq.s32.totalorder %s29, 0
      %p265 = por %p263, %p264
      %p266 = scmp.ne.s32.totalorder %s252, %s253
      %p267 = scmp.eq.s32.totalorder %s30, 1
      %p268 = por %p266, %p267
      %p270 = scmp.ne.s32.totalorder %s253, %s269
      %p271 = scmp.eq.s32.totalorder %s30, 0
      %p272 = por %p270, %p271
      %p273 = scmp.le.s32.totalorder 1, %s24
      %p274 = scmp.lt.s32.totalorder %s24, 3
      %p275 = pnand %p273, %p274
      %p276 = pneg %p275
      // Predicated region
      $region9: #{tpu_custom_call.1} parent=5 // pred_check
        _
      $region10: #{tpu_custom_call.1} parent=5 // pred_check_branch
        %278 = sbr.rel (%p275) target = $region12
      $region11: #{tpu_custom_call.1} parent=5 // pred_region
        %s279 = ssub.s32 %s24, 1
        // Predicated region
        $region13: #{tpu_custom_call.1} parent=11 // pred_check
          %p280 = pneg %p71
        $region14: #{tpu_custom_call.1} parent=11 // pred_check_branch
          %282 = sbr.rel (%p280) target = $region16
        $region15: #{tpu_custom_call.1} parent=11 // pred_region
          %s284 = ssub.s32 2048, 2048
          %285 = vsyncadd [#allocation6], %s284
          %s286 = sshll.u32 [#allocation5], 4
          %s287 = int_to_ptr.vmem [resolvable:$true] %s286
          %292 = dma.hbm_to_vmem [thread:$0]  %s1, 2048, %s287, [#allocation6], 128, 128, 8
        $region16: #{tpu_custom_call.1} parent=11 // pred_fallthru
          _
        // Predicated region
        $region17: #{tpu_custom_call.1} parent=11 // pred_check
          %p293 = pneg %p92
        $region18: #{tpu_custom_call.1} parent=11 // pred_check_branch
          %295 = sbr.rel (%p293) target = $region20
        $region19: #{tpu_custom_call.1} parent=11 // pred_region
          _
        $region20: #{tpu_custom_call.1} parent=11 // pred_fallthru
          _
        // Predicated region
        $region21: #{tpu_custom_call.1} parent=11 // pred_check
          %p296 = pneg %p113
        $region22: #{tpu_custom_call.1} parent=11 // pred_check_branch
          %298 = sbr.rel (%p296) target = $region24
        $region23: #{tpu_custom_call.1} parent=11 // pred_region
          _
        $region24: #{tpu_custom_call.1} parent=11 // pred_fallthru
          _
        // Predicated region
        $region25: #{tpu_custom_call.1} parent=11 // pred_check
          %p299 = pneg %p134
        $region26: #{tpu_custom_call.1} parent=11 // pred_check_branch
          %301 = sbr.rel (%p299) target = $region28
        $region27: #{tpu_custom_call.1} parent=11 // pred_region
          %s303 = ssub.s32 12288, 12288
          %304 = vsyncadd [#allocation6], %s303
          %s305 = sshll.u32 [#allocation7], 4
          %s306 = int_to_ptr.vmem [resolvable:$true] %s305
          %311 = dma.hbm_to_vmem [thread:$0]  %s4, 12288, %s306, [#allocation6], 128, 128, 8
        $region28: #{tpu_custom_call.1} parent=11 // pred_fallthru
          _
        // Predicated region
        $region29: #{tpu_custom_call.1} parent=11 // pred_check
          %p312 = pneg %p155
        $region30: #{tpu_custom_call.1} parent=11 // pred_check_branch
          %314 = sbr.rel (%p312) target = $region32
        $region31: #{tpu_custom_call.1} parent=11 // pred_region
          _
        $region32: #{tpu_custom_call.1} parent=11 // pred_fallthru
          _
        // Predicated region
        $region33: #{tpu_custom_call.1} parent=11 // pred_check
          %p315 = pneg %p176
        $region34: #{tpu_custom_call.1} parent=11 // pred_check_branch
          %317 = sbr.rel (%p315) target = $region36
        $region35: #{tpu_custom_call.1} parent=11 // pred_region
          _
        $region36: #{tpu_custom_call.1} parent=11 // pred_fallthru
          _
        // Predicated region
        $region37: #{tpu_custom_call.1} parent=11 // pred_check
          %p318 = pneg %p197
        $region38: #{tpu_custom_call.1} parent=11 // pred_check_branch
          %320 = sbr.rel (%p318) target = $region40
        $region39: #{tpu_custom_call.1} parent=11 // pred_region
          %s322 = ssub.s32 2048, 2048
          %323 = vsyncadd [#allocation9], %s322
          %s324 = sshll.u32 [#allocation8], 4
          %s325 = int_to_ptr.vmem [resolvable:$true] %s324
          %330 = dma.hbm_to_vmem [thread:$0]  %s7, 2048, %s325, [#allocation9], 64, 64, 4
        $region40: #{tpu_custom_call.1} parent=11 // pred_fallthru
          _
        // Predicated region
        $region41: #{tpu_custom_call.1} parent=11 // pred_check
          %p331 = pneg %p218
        $region42: #{tpu_custom_call.1} parent=11 // pred_check_branch
          %333 = sbr.rel (%p331) target = $region44
        $region43: #{tpu_custom_call.1} parent=11 // pred_region
          _
        $region44: #{tpu_custom_call.1} parent=11 // pred_fallthru
          _
        // Predicated region
        $region45: #{tpu_custom_call.1} parent=11 // pred_check
          %p334 = pneg %p239
        $region46: #{tpu_custom_call.1} parent=11 // pred_check_branch
          %336 = sbr.rel (%p334) target = $region48
        $region47: #{tpu_custom_call.1} parent=11 // pred_region
          _
        $region48: #{tpu_custom_call.1} parent=11 // pred_fallthru
          _
      $region12: #{tpu_custom_call.1} parent=5 // pred_fallthru
        _
      %p337 = scmp.lt.s32.totalorder %s24, 2
      // Predicated region
      $region49: #{tpu_custom_call.1} parent=5 // pred_check
        %p338 = pneg %p337
      $region50: #{tpu_custom_call.1} parent=5 // pred_check_branch
        %340 = sbr.rel (%p338) target = $region52
      $region51: #{tpu_custom_call.1} parent=5 // pred_region
        // Predicated region
        $region53: #{tpu_custom_call.1} parent=51 // pred_check
          %p341 = pneg %p44
        $region54: #{tpu_custom_call.1} parent=51 // pred_check_branch
          %343 = sbr.rel (%p341) target = $region56
        $region55: #{tpu_custom_call.1} parent=51 // pred_region
          %s344 = sand.u32 %s34, 1
          %s345 = scalar_lea.sflag [#allocation3], %s344
          %s346 = sand.u32 %s34, 1
          %s347 = smul.addr %s346, 16
          %s348 = scalar_lea.vmem [#allocation2], %s347
          %s350 = ssub.s32 256, 256
          %351 = vsyncadd %s345, %s350
          %s352 = smul.addr %s24, 2
          %s353 = smul.addr %s352, 128
          %s354 = scalar_lea.hbm %s0, %s353
          %s355 = sshll.u32 %s348, 4
          %s356 = int_to_ptr.vmem [resolvable:$true] %s355
          %361 = dma.hbm_to_vmem [thread:$0]  %s354, 256, %s356, %s345, 128, 128, 8
        $region56: #{tpu_custom_call.1} parent=51 // pred_fallthru
          _
      $region52: #{tpu_custom_call.1} parent=5 // pred_fallthru
        _
      %p362 = scmp.le.s32.totalorder 1, %s24
      %p363 = scmp.lt.s32.totalorder %s24, 3
      %p364 = pnand %p362, %p363
      %p365 = pneg %p364
      // Predicated region
      $region57: #{tpu_custom_call.1} parent=5 // pred_check
        _
      $region58: #{tpu_custom_call.1} parent=5 // pred_check_branch
        %367 = sbr.rel (%p364) target = $region60
      $region59: #{tpu_custom_call.1} parent=5 // pred_region
        %s368 = ssub.s32 %s24, 1
        %s369 = sand.u32 %s37, 1
        %s370 = scalar_lea.sflag [#allocation3], %s369
        %s371 = sand.u32 %s37, 1
        %s372 = smul.addr %s371, 16
        %s373 = scalar_lea.vmem [#allocation2], %s372
        // Predicated region
        $region61: #{tpu_custom_call.1} parent=59 // pred_check
          %p374 = pneg %p50
        $region62: #{tpu_custom_call.1} parent=59 // pred_check_branch
          %376 = sbr.rel (%p374) target = $region64
        $region63: #{tpu_custom_call.1} parent=59 // pred_region
          %377 = dma.done %s370, 256
        $region64: #{tpu_custom_call.1} parent=59 // pred_fallthru
          _
        // Predicated region
        $region65: #{tpu_custom_call.1} parent=59 // pred_check
          %p378 = pneg %p71
        $region66: #{tpu_custom_call.1} parent=59 // pred_check_branch
          %380 = sbr.rel (%p378) target = $region68
        $region67: #{tpu_custom_call.1} parent=59 // pred_region
          %381 = dma.done [#allocation6], 2048
        $region68: #{tpu_custom_call.1} parent=59 // pred_fallthru
          _
        // Predicated region
        $region69: #{tpu_custom_call.1} parent=59 // pred_check
          %p382 = pneg %p134
        $region70: #{tpu_custom_call.1} parent=59 // pred_check_branch
          %384 = sbr.rel (%p382) target = $region72
        $region71: #{tpu_custom_call.1} parent=59 // pred_region
          %385 = dma.done [#allocation6], 12288
        $region72: #{tpu_custom_call.1} parent=59 // pred_fallthru
          _
        // Predicated region
        $region73: #{tpu_custom_call.1} parent=59 // pred_check
          %p386 = pneg %p197
        $region74: #{tpu_custom_call.1} parent=59 // pred_check_branch
          %388 = sbr.rel (%p386) target = $region76
        $region75: #{tpu_custom_call.1} parent=59 // pred_region
          %389 = dma.done [#allocation9], 2048
        $region76: #{tpu_custom_call.1} parent=59 // pred_fallthru
          _
        %s390 = sand.u32 %s37, 1
        %s391 = scalar_lea.sflag [#allocation3], %s390
        %s392 = sand.u32 %s37, 1
        %s393 = smul.addr %s392, 16
        %s394 = scalar_lea.vmem [#allocation2], %s393
        %p395 = pneg %p50
        %p396 = pneg %p47
        %p397 = pneg %p71
        %p398 = pneg %p68
        %p399 = pneg %p92
        %p400 = pneg %p89
        %p401 = pneg %p113
        %p402 = pneg %p110
        %p403 = pneg %p134
        %p404 = pneg %p131
        %p405 = pneg %p155
        %p406 = pneg %p152
        %p407 = pneg %p176
        %p408 = pneg %p173
        %p409 = pneg %p197
        %p410 = pneg %p194
        %p411 = pneg %p218
        %p412 = pneg %p215
        %p413 = pneg %p239
        %p414 = pneg %p236
        %p415 = pneg %p265
        %p416 = pneg %p262
        %s417 = sand.u32 %s252, 1
        %s418 = scalar_lea.sflag [#allocation4], %s417
        %s419 = sand.u32 %s252, 1
        %s420 = smul.addr %s419, 16
        %s421 = scalar_lea.vmem [#allocation10], %s420
        %v423 = vld [vmem:[%s373] sm:$0xff]
        %v424 = vld [vmem:[%s373 + $0x8] sm:$0xff]
        %v425 = vpack.c.bf16 %v424, %v423
        %v426 = vld [vmem:[#allocation5] sm:$0xff]
        %v427 = vld [vmem:[#allocation5 + $0x8] sm:$0xff]
        %v428 = vld [vmem:[#allocation5 + $0x10] sm:$0xff]
        %v429 = vld [vmem:[#allocation5 + $0x18] sm:$0xff]
        %v430 = vld [vmem:[#allocation5 + $0x20] sm:$0xff]
        %v431 = vld [vmem:[#allocation5 + $0x28] sm:$0xff]
        %v432 = vld [vmem:[#allocation5 + $0x30] sm:$0xff]
        %v433 = vld [vmem:[#allocation5 + $0x38] sm:$0xff]
        %v434 = vld [vmem:[#allocation5 + $0x40] sm:$0xff]
        %v435 = vld [vmem:[#allocation5 + $0x48] sm:$0xff]
        %v436 = vld [vmem:[#allocation5 + $0x50] sm:$0xff]
        %v437 = vld [vmem:[#allocation5 + $0x58] sm:$0xff]
        %v438 = vld [vmem:[#allocation5 + $0x60] sm:$0xff]
        %v439 = vld [vmem:[#allocation5 + $0x68] sm:$0xff]
        %v440 = vld [vmem:[#allocation5 + $0x70] sm:$0xff]
        %v441 = vld [vmem:[#allocation5 + $0x78] sm:$0xff]
        %v458 = vunpack.c.l.b16 %v426
        %v459 = vunpack.c.h.b16 %v426
        %v460 = vunpack.c.l.b16 %v427
        %v461 = vunpack.c.h.b16 %v427
        %v462 = vunpack.c.l.b16 %v428
        %v463 = vunpack.c.h.b16 %v428
        %v464 = vunpack.c.l.b16 %v429
        %v465 = vunpack.c.h.b16 %v429
        %v466 = vunpack.c.l.b16 %v430
        %v467 = vunpack.c.h.b16 %v430
        %v468 = vunpack.c.l.b16 %v431
        %v469 = vunpack.c.h.b16 %v431
        %v470 = vunpack.c.l.b16 %v432
        %v471 = vunpack.c.h.b16 %v432
        %v472 = vunpack.c.l.b16 %v433
        %v473 = vunpack.c.h.b16 %v433
        %v474 = vunpack.c.l.b16 %v434
        %v475 = vunpack.c.h.b16 %v434
        %v476 = vunpack.c.l.b16 %v435
        %v477 = vunpack.c.h.b16 %v435
        %v478 = vunpack.c.l.b16 %v436
        %v479 = vunpack.c.h.b16 %v436
        %v480 = vunpack.c.l.b16 %v437
        %v481 = vunpack.c.h.b16 %v437
        %v482 = vunpack.c.l.b16 %v438
        %v483 = vunpack.c.h.b16 %v438
        %v484 = vunpack.c.l.b16 %v439
        %v485 = vunpack.c.h.b16 %v439
        %v486 = vunpack.c.l.b16 %v440
        %v487 = vunpack.c.h.b16 %v440
        %v488 = vunpack.c.l.b16 %v441
        %v489 = vunpack.c.h.b16 %v441
        %v490 = vpack.c.b16 %v460, %v458
        %v491 = vpack.c.b16 %v461, %v459
        %v492 = vpack.c.b16 %v464, %v462
        %v493 = vpack.c.b16 %v465, %v463
        %v494 = vpack.c.b16 %v468, %v466
        %v495 = vpack.c.b16 %v469, %v467
        %v496 = vpack.c.b16 %v472, %v470
        %v497 = vpack.c.b16 %v473, %v471
        %v498 = vpack.c.b16 %v476, %v474
        %v499 = vpack.c.b16 %v477, %v475
        %v500 = vpack.c.b16 %v480, %v478
        %v501 = vpack.c.b16 %v481, %v479
        %v502 = vpack.c.b16 %v484, %v482
        %v503 = vpack.c.b16 %v485, %v483
        %v504 = vpack.c.b16 %v488, %v486
        %v505 = vpack.c.b16 %v489, %v487
        %522 = vmatprep.subr.bf16.mxu0 %v491
        %523 = vmatpush1.bf16.msra.mxu0 %v490
        %524 = vmatprep.subr.bf16.mxu0 %v493
        %525 = vmatpush1.bf16.msra.mxu0 %v492
        %526 = vmatprep.subr.bf16.mxu0 %v495
        %527 = vmatpush1.bf16.msra.mxu0 %v494
        %528 = vmatprep.subr.bf16.mxu0 %v497
        %529 = vmatpush1.bf16.msra.mxu0 %v496
        %530 = vmatprep.subr.bf16.mxu0 %v499
        %531 = vmatpush1.bf16.msra.mxu0 %v498
        %532 = vmatprep.subr.bf16.mxu0 %v501
        %533 = vmatpush1.bf16.msra.mxu0 %v500
        %534 = vmatprep.subr.bf16.mxu0 %v503
        %535 = vmatpush1.bf16.msra.mxu0 %v502
        %536 = vmatprep.subr.bf16.mxu0 %v505
        %537 = vmatpush1.bf16.msra.mxu0 %v504
        %538 = vmatprep.subr.bf16.mxu0 0
        %539 = vmatpush1.bf16.msra.mxu0 0
        %540 = vmatprep.subr.bf16.mxu0 0
        %541 = vmatpush1.bf16.msra.mxu0 0
        %542 = vmatprep.subr.bf16.mxu0 0
        %543 = vmatpush1.bf16.msra.mxu0 0
        %544 = vmatprep.subr.bf16.mxu0 0
        %545 = vmatpush1.bf16.msra.mxu0 0
        %546 = vmatprep.subr.bf16.mxu0 0
        %547 = vmatpush1.bf16.msra.mxu0 0
        %548 = vmatprep.subr.bf16.mxu0 0
        %549 = vmatpush1.bf16.msra.mxu0 0
        %550 = vmatprep.subr.bf16.mxu0 0
        %551 = vmatpush1.bf16.msra.mxu0 0
        %552 = vmatprep.subr.bf16.mxu0 0
        %553 = vmatpush1.bf16.msra.mxu0 0
        %554 = vmatprep.mubr.bf16.mxu0 0
        %555 = vmatmul.mubr.bf16.gmra.mrb[0].mxu0 %v425
        %v556 = vpop.f32.mrb[0].mxu0
        %v557 = vadd.f32 0.0, %v556
        %v558 = vpop.f32.mrb[0].mxu0
        %v559 = vadd.f32 0.0, %v558
        %v560 = vpop.f32.mrb[0].mxu0
        %v561 = vadd.f32 0.0, %v560
        %v562 = vpop.f32.mrb[0].mxu0
        %v563 = vadd.f32 0.0, %v562
        %564 = vdwg.mxu0
        %v565 = vld [vmem:[%s2] sm:$0x3]
        %v567 = vlaneseq
        %v568 = vshrl.u32 %v567, 7
        %v569 = vsub.s32 0, %v568
        %v570 = vrot.slane %v565, %v569
        %v571 = vlaneseq
        %v572 = vshrl.u32 %v571, 7
        %v573 = vsub.s32 1, %v572
        %v574 = vrot.slane %v565, %v573
        %v577 = vmul.f32 %v557, %v570
        %v578 = vmul.f32 %v559, %v574
        %v579 = vmul.f32 %v561, %v570
        %v580 = vmul.f32 %v563, %v574
        %v581 = vld [vmem:[%s3] sm:$0x3]
        %v583 = vlaneseq
        %v584 = vshrl.u32 %v583, 7
        %v585 = vsub.s32 0, %v584
        %v586 = vrot.slane %v581, %v585
        %v587 = vlaneseq
        %v588 = vshrl.u32 %v587, 7
        %v589 = vsub.s32 1, %v588
        %v590 = vrot.slane %v581, %v589
        %v593 = vadd.f32 %v577, %v586
        %v594 = vadd.f32 %v578, %v590
        %v595 = vadd.f32 %v579, %v586
        %v596 = vadd.f32 %v580, %v590
        %v597 = vmax.f32 %v593, 0.0
        %v598 = vmax.f32 %v594, 0.0
        %v599 = vmax.f32 %v595, 0.0
        %v600 = vmax.f32 %v596, 0.0
        %v601 = vpack.c.bf16 %v599, %v597
        %v602 = vpack.c.bf16 %v600, %v598
        %v604 = vshrl.u32 %v601, 16
        %v606 = vrot.slane %v604, 7
        %v607 = vshll.u32 %v601, 16
        %v609 = vor.u32 %v606, %v607
        %v611 = vshrl.u32 %v602, 16
        %v613 = vrot.slane %v611, 7
        %v614 = vshll.u32 %v602, 16
        %v616 = vor.u32 %v613, %v614
        %vm621 = vcmask 1040384
        %vm622 = vsmask.f32 256
        %vm623 = vmand %vm621, %vm622
        %v624 = vsel %vm623, 0, %v609
        %v625 = vsel %vm623, 0, %v616
        %v626 = vsel %vm623, %v606, 0
        %v627 = vsel %vm623, %v613, 0
        %v628 = vld [vmem:[#allocation7] sm:$0xff]
        %v629 = vld [vmem:[#allocation7 + $0x8] sm:$0xff]
        %v630 = vld [vmem:[#allocation7 + $0x10] sm:$0xff]
        %v631 = vld [vmem:[#allocation7 + $0x18] sm:$0xff]
        %v632 = vld [vmem:[#allocation7 + $0x20] sm:$0xff]
        %v633 = vld [vmem:[#allocation7 + $0x28] sm:$0xff]
        %v634 = vld [vmem:[#allocation7 + $0x30] sm:$0xff]
        %v635 = vld [vmem:[#allocation7 + $0x38] sm:$0xff]
        %v636 = vld [vmem:[#allocation7 + $0x40] sm:$0xff]
        %v637 = vld [vmem:[#allocation7 + $0x48] sm:$0xff]
        %v638 = vld [vmem:[#allocation7 + $0x50] sm:$0xff]
        %v639 = vld [vmem:[#allocation7 + $0x58] sm:$0xff]
        %v640 = vld [vmem:[#allocation7 + $0x60] sm:$0xff]
        %v641 = vld [vmem:[#allocation7 + $0x68] sm:$0xff]
        %v642 = vld [vmem:[#allocation7 + $0x70] sm:$0xff]
        %v643 = vld [vmem:[#allocation7 + $0x78] sm:$0xff]
        %v644 = vld [vmem:[#allocation7 + $0x80] sm:$0xff]
        %v645 = vld [vmem:[#allocation7 + $0x88] sm:$0xff]
        %v646 = vld [vmem:[#allocation7 + $0x90] sm:$0xff]
        %v647 = vld [vmem:[#allocation7 + $0x98] sm:$0xff]
        %v648 = vld [vmem:[#allocation7 + $0xa0] sm:$0xff]
        %v649 = vld [vmem:[#allocation7 + $0xa8] sm:$0xff]
        %v650 = vld [vmem:[#allocation7 + $0xb0] sm:$0xff]
        %v651 = vld [vmem:[#allocation7 + $0xb8] sm:$0xff]
        %v652 = vld [vmem:[#allocation7 + $0xc0] sm:$0xff]
        %v653 = vld [vmem:[#allocation7 + $0xc8] sm:$0xff]
        %v654 = vld [vmem:[#allocation7 + $0xd0] sm:$0xff]
        %v655 = vld [vmem:[#allocation7 + $0xd8] sm:$0xff]
        %v656 = vld [vmem:[#allocation7 + $0xe0] sm:$0xff]
        %v657 = vld [vmem:[#allocation7 + $0xe8] sm:$0xff]
        %v658 = vld [vmem:[#allocation7 + $0xf0] sm:$0xff]
        %v659 = vld [vmem:[#allocation7 + $0xf8] sm:$0xff]
        %s660 = scalar_lea.vmem [#allocation7], 256
        %v661 = vld [vmem:[%s660] sm:$0xff]
        %v662 = vld [vmem:[%s660 + $0x8] sm:$0xff]
        %v663 = vld [vmem:[%s660 + $0x10] sm:$0xff]
        %v664 = vld [vmem:[%s660 + $0x18] sm:$0xff]
        %v665 = vld [vmem:[%s660 + $0x20] sm:$0xff]
        %v666 = vld [vmem:[%s660 + $0x28] sm:$0xff]
        %v667 = vld [vmem:[%s660 + $0x30] sm:$0xff]
        %v668 = vld [vmem:[%s660 + $0x38] sm:$0xff]
        %v669 = vld [vmem:[%s660 + $0x40] sm:$0xff]
        %v670 = vld [vmem:[%s660 + $0x48] sm:$0xff]
        %v671 = vld [vmem:[%s660 + $0x50] sm:$0xff]
        %v672 = vld [vmem:[%s660 + $0x58] sm:$0xff]
        %v673 = vld [vmem:[%s660 + $0x60] sm:$0xff]
        %v674 = vld [vmem:[%s660 + $0x68] sm:$0xff]
        %v675 = vld [vmem:[%s660 + $0x70] sm:$0xff]
        %v676 = vld [vmem:[%s660 + $0x78] sm:$0xff]
        %v677 = vld [vmem:[%s660 + $0x80] sm:$0xff]
        %v678 = vld [vmem:[%s660 + $0x88] sm:$0xff]
        %v679 = vld [vmem:[%s660 + $0x90] sm:$0xff]
        %v680 = vld [vmem:[%s660 + $0x98] sm:$0xff]
        %v681 = vld [vmem:[%s660 + $0xa0] sm:$0xff]
        %v682 = vld [vmem:[%s660 + $0xa8] sm:$0xff]
        %v683 = vld [vmem:[%s660 + $0xb0] sm:$0xff]
        %v684 = vld [vmem:[%s660 + $0xb8] sm:$0xff]
        %v685 = vld [vmem:[%s660 + $0xc0] sm:$0xff]
        %v686 = vld [vmem:[%s660 + $0xc8] sm:$0xff]
        %v687 = vld [vmem:[%s660 + $0xd0] sm:$0xff]
        %v688 = vld [vmem:[%s660 + $0xd8] sm:$0xff]
        %v689 = vld [vmem:[%s660 + $0xe0] sm:$0xff]
        %v690 = vld [vmem:[%s660 + $0xe8] sm:$0xff]
        %v691 = vld [vmem:[%s660 + $0xf0] sm:$0xff]
        %v692 = vld [vmem:[%s660 + $0xf8] sm:$0xff]
        %vm693 = vsmask.f32 7424
        %v695 = vshrl.u32 %v624, 16
        %v697 = vshll.u32 %v624, 16
        %v699 = vrot.slane %v697, 1
        %v700 = vor.u32 %v695, %v699
        %v702 = vshll.u32 %v626, 16
        %v704 = vrot.slane %v702, 1
        %v705 = vsel %vm693, %v700, %v704
        %v707 = vshrl.u32 %v625, 16
        %v709 = vshll.u32 %v625, 16
        %v711 = vrot.slane %v709, 1
        %v712 = vor.u32 %v707, %v711
        %v714 = vshll.u32 %v627, 16
        %v716 = vrot.slane %v714, 1
        %v717 = vsel %vm693, %v712, %v716
        %v752 = vunpack.c.l.b16 %v661
        %v753 = vunpack.c.h.b16 %v661
        %v754 = vunpack.c.l.b16 %v662
        %v755 = vunpack.c.h.b16 %v662
        %v756 = vunpack.c.l.b16 %v663
        %v757 = vunpack.c.h.b16 %v663
        %v758 = vunpack.c.l.b16 %v664
        %v759 = vunpack.c.h.b16 %v664
        %v760 = vunpack.c.l.b16 %v665
        %v761 = vunpack.c.h.b16 %v665
        %v762 = vunpack.c.l.b16 %v666
        %v763 = vunpack.c.h.b16 %v666
        %v764 = vunpack.c.l.b16 %v667
        %v765 = vunpack.c.h.b16 %v667
        %v766 = vunpack.c.l.b16 %v668
        %v767 = vunpack.c.h.b16 %v668
        %v768 = vunpack.c.l.b16 %v669
        %v769 = vunpack.c.h.b16 %v669
        %v770 = vunpack.c.l.b16 %v670
        %v771 = vunpack.c.h.b16 %v670
        %v772 = vunpack.c.l.b16 %v671
        %v773 = vunpack.c.h.b16 %v671
        %v774 = vunpack.c.l.b16 %v672
        %v775 = vunpack.c.h.b16 %v672
        %v776 = vunpack.c.l.b16 %v673
        %v777 = vunpack.c.h.b16 %v673
        %v778 = vunpack.c.l.b16 %v674
        %v779 = vunpack.c.h.b16 %v674
        %v780 = vunpack.c.l.b16 %v675
        %v781 = vunpack.c.h.b16 %v675
        %v782 = vunpack.c.l.b16 %v676
        %v783 = vunpack.c.h.b16 %v676
        %v784 = vunpack.c.l.b16 %v677
        %v785 = vunpack.c.h.b16 %v677
        %v786 = vunpack.c.l.b16 %v678
        %v787 = vunpack.c.h.b16 %v678
        %v788 = vunpack.c.l.b16 %v679
        %v789 = vunpack.c.h.b16 %v679
        %v790 = vunpack.c.l.b16 %v680
        %v791 = vunpack.c.h.b16 %v680
        %v792 = vunpack.c.l.b16 %v681
        %v793 = vunpack.c.h.b16 %v681
        %v794 = vunpack.c.l.b16 %v682
        %v795 = vunpack.c.h.b16 %v682
        %v796 = vunpack.c.l.b16 %v683
        %v797 = vunpack.c.h.b16 %v683
        %v798 = vunpack.c.l.b16 %v684
        %v799 = vunpack.c.h.b16 %v684
        %v800 = vunpack.c.l.b16 %v685
        %v801 = vunpack.c.h.b16 %v685
        %v802 = vunpack.c.l.b16 %v686
        %v803 = vunpack.c.h.b16 %v686
        %v804 = vunpack.c.l.b16 %v687
        %v805 = vunpack.c.h.b16 %v687
        %v806 = vunpack.c.l.b16 %v688
        %v807 = vunpack.c.h.b16 %v688
        %v808 = vunpack.c.l.b16 %v689
        %v809 = vunpack.c.h.b16 %v689
        %v810 = vunpack.c.l.b16 %v690
        %v811 = vunpack.c.h.b16 %v690
        %v812 = vunpack.c.l.b16 %v691
        %v813 = vunpack.c.h.b16 %v691
        %v814 = vunpack.c.l.b16 %v692
        %v815 = vunpack.c.h.b16 %v692
        %v816 = vpack.c.b16 %v754, %v752
        %v817 = vpack.c.b16 %v755, %v753
        %v818 = vpack.c.b16 %v758, %v756
        %v819 = vpack.c.b16 %v759, %v757
        %v820 = vpack.c.b16 %v762, %v760
        %v821 = vpack.c.b16 %v763, %v761
        %v822 = vpack.c.b16 %v766, %v764
        %v823 = vpack.c.b16 %v767, %v765
        %v824 = vpack.c.b16 %v770, %v768
        %v825 = vpack.c.b16 %v771, %v769
        %v826 = vpack.c.b16 %v774, %v772
        %v827 = vpack.c.b16 %v775, %v773
        %v828 = vpack.c.b16 %v778, %v776
        %v829 = vpack.c.b16 %v779, %v777
        %v830 = vpack.c.b16 %v782, %v780
        %v831 = vpack.c.b16 %v783, %v781
        %v832 = vpack.c.b16 %v786, %v784
        %v833 = vpack.c.b16 %v787, %v785
        %v834 = vpack.c.b16 %v790, %v788
        %v835 = vpack.c.b16 %v791, %v789
        %v836 = vpack.c.b16 %v794, %v792
        %v837 = vpack.c.b16 %v795, %v793
        %v838 = vpack.c.b16 %v798, %v796
        %v839 = vpack.c.b16 %v799, %v797
        %v840 = vpack.c.b16 %v802, %v800
        %v841 = vpack.c.b16 %v803, %v801
        %v842 = vpack.c.b16 %v806, %v804
        %v843 = vpack.c.b16 %v807, %v805
        %v844 = vpack.c.b16 %v810, %v808
        %v845 = vpack.c.b16 %v811, %v809
        %v846 = vpack.c.b16 %v814, %v812
        %v847 = vpack.c.b16 %v815, %v813
        %880 = vmatprep.subr.bf16.mxu0 %v817
        %881 = vmatpush1.bf16.msra.mxu0 %v816
        %882 = vmatprep.subr.bf16.mxu0 %v819
        %883 = vmatpush1.bf16.msra.mxu0 %v818
        %884 = vmatprep.subr.bf16.mxu0 %v821
        %885 = vmatpush1.bf16.msra.mxu0 %v820
        %886 = vmatprep.subr.bf16.mxu0 %v823
        %887 = vmatpush1.bf16.msra.mxu0 %v822
        %888 = vmatprep.subr.bf16.mxu0 %v825
        %889 = vmatpush1.bf16.msra.mxu0 %v824
        %890 = vmatprep.subr.bf16.mxu0 %v827
        %891 = vmatpush1.bf16.msra.mxu0 %v826
        %892 = vmatprep.subr.bf16.mxu0 %v829
        %893 = vmatpush1.bf16.msra.mxu0 %v828
        %894 = vmatprep.subr.bf16.mxu0 %v831
        %895 = vmatpush1.bf16.msra.mxu0 %v830
        %896 = vmatprep.subr.bf16.mxu0 %v833
        %897 = vmatpush1.bf16.msra.mxu0 %v832
        %898 = vmatprep.subr.bf16.mxu0 %v835
        %899 = vmatpush1.bf16.msra.mxu0 %v834
        %900 = vmatprep.subr.bf16.mxu0 %v837
        %901 = vmatpush1.bf16.msra.mxu0 %v836
        %902 = vmatprep.subr.bf16.mxu0 %v839
        %903 = vmatpush1.bf16.msra.mxu0 %v838
        %904 = vmatprep.subr.bf16.mxu0 %v841
        %905 = vmatpush1.bf16.msra.mxu0 %v840
        %906 = vmatprep.subr.bf16.mxu0 %v843
        %907 = vmatpush1.bf16.msra.mxu0 %v842
        %908 = vmatprep.subr.bf16.mxu0 %v845
        %909 = vmatpush1.bf16.msra.mxu0 %v844
        %910 = vmatprep.subr.bf16.mxu0 %v847
        %911 = vmatpush1.bf16.msra.mxu0 %v846
        %912 = vmatprep.mubr.bf16.mxu0 %v717
        %913 = vmatmul.mubr.bf16.gmra.mrb[0].mxu0 %v705
        %v914 = vpop.f32.mrb[0].mxu0
        %v915 = vadd.f32 0.0, %v914
        %v916 = vpop.f32.mrb[0].mxu0
        %v917 = vadd.f32 0.0, %v916
        %v918 = vpop.f32.mrb[0].mxu0
        %v919 = vadd.f32 0.0, %v918
        %v920 = vpop.f32.mrb[0].mxu0
        %v921 = vadd.f32 0.0, %v920
        %922 = vdwg.mxu0
        %v955 = vunpack.c.l.b16 %v628
        %v956 = vunpack.c.h.b16 %v628
        %v957 = vunpack.c.l.b16 %v629
        %v958 = vunpack.c.h.b16 %v629
        %v959 = vunpack.c.l.b16 %v630
        %v960 = vunpack.c.h.b16 %v630
        %v961 = vunpack.c.l.b16 %v631
        %v962 = vunpack.c.h.b16 %v631
        %v963 = vunpack.c.l.b16 %v632
        %v964 = vunpack.c.h.b16 %v632
        %v965 = vunpack.c.l.b16 %v633
        %v966 = vunpack.c.h.b16 %v633
        %v967 = vunpack.c.l.b16 %v634
        %v968 = vunpack.c.h.b16 %v634
        %v969 = vunpack.c.l.b16 %v635
        %v970 = vunpack.c.h.b16 %v635
        %v971 = vunpack.c.l.b16 %v636
        %v972 = vunpack.c.h.b16 %v636
        %v973 = vunpack.c.l.b16 %v637
        %v974 = vunpack.c.h.b16 %v637
        %v975 = vunpack.c.l.b16 %v638
        %v976 = vunpack.c.h.b16 %v638
        %v977 = vunpack.c.l.b16 %v639
        %v978 = vunpack.c.h.b16 %v639
        %v979 = vunpack.c.l.b16 %v640
        %v980 = vunpack.c.h.b16 %v640
        %v981 = vunpack.c.l.b16 %v641
        %v982 = vunpack.c.h.b16 %v641
        %v983 = vunpack.c.l.b16 %v642
        %v984 = vunpack.c.h.b16 %v642
        %v985 = vunpack.c.l.b16 %v643
        %v986 = vunpack.c.h.b16 %v643
        %v987 = vunpack.c.l.b16 %v644
        %v988 = vunpack.c.h.b16 %v644
        %v989 = vunpack.c.l.b16 %v645
        %v990 = vunpack.c.h.b16 %v645
        %v991 = vunpack.c.l.b16 %v646
        %v992 = vunpack.c.h.b16 %v646
        %v993 = vunpack.c.l.b16 %v647
        %v994 = vunpack.c.h.b16 %v647
        %v995 = vunpack.c.l.b16 %v648
        %v996 = vunpack.c.h.b16 %v648
        %v997 = vunpack.c.l.b16 %v649
        %v998 = vunpack.c.h.b16 %v649
        %v999 = vunpack.c.l.b16 %v650
        %v1000 = vunpack.c.h.b16 %v650
        %v1001 = vunpack.c.l.b16 %v651
        %v1002 = vunpack.c.h.b16 %v651
        %v1003 = vunpack.c.l.b16 %v652
        %v1004 = vunpack.c.h.b16 %v652
        %v1005 = vunpack.c.l.b16 %v653
        %v1006 = vunpack.c.h.b16 %v653
        %v1007 = vunpack.c.l.b16 %v654
        %v1008 = vunpack.c.h.b16 %v654
        %v1009 = vunpack.c.l.b16 %v655
        %v1010 = vunpack.c.h.b16 %v655
        %v1011 = vunpack.c.l.b16 %v656
        %v1012 = vunpack.c.h.b16 %v656
        %v1013 = vunpack.c.l.b16 %v657
        %v1014 = vunpack.c.h.b16 %v657
        %v1015 = vunpack.c.l.b16 %v658
        %v1016 = vunpack.c.h.b16 %v658
        %v1017 = vunpack.c.l.b16 %v659
        %v1018 = vunpack.c.h.b16 %v659
        %v1019 = vpack.c.b16 %v957, %v955
        %v1020 = vpack.c.b16 %v958, %v956
        %v1021 = vpack.c.b16 %v961, %v959
        %v1022 = vpack.c.b16 %v962, %v960
        %v1023 = vpack.c.b16 %v965, %v963
        %v1024 = vpack.c.b16 %v966, %v964
        %v1025 = vpack.c.b16 %v969, %v967
        %v1026 = vpack.c.b16 %v970, %v968
        %v1027 = vpack.c.b16 %v973, %v971
        %v1028 = vpack.c.b16 %v974, %v972
        %v1029 = vpack.c.b16 %v977, %v975
        %v1030 = vpack.c.b16 %v978, %v976
        %v1031 = vpack.c.b16 %v981, %v979
        %v1032 = vpack.c.b16 %v982, %v980
        %v1033 = vpack.c.b16 %v985, %v983
        %v1034 = vpack.c.b16 %v986, %v984
        %v1035 = vpack.c.b16 %v989, %v987
        %v1036 = vpack.c.b16 %v990, %v988
        %v1037 = vpack.c.b16 %v993, %v991
        %v1038 = vpack.c.b16 %v994, %v992
        %v1039 = vpack.c.b16 %v997, %v995
        %v1040 = vpack.c.b16 %v998, %v996
        %v1041 = vpack.c.b16 %v1001, %v999
        %v1042 = vpack.c.b16 %v1002, %v1000
        %v1043 = vpack.c.b16 %v1005, %v1003
        %v1044 = vpack.c.b16 %v1006, %v1004
        %v1045 = vpack.c.b16 %v1009, %v1007
        %v1046 = vpack.c.b16 %v1010, %v1008
        %v1047 = vpack.c.b16 %v1013, %v1011
        %v1048 = vpack.c.b16 %v1014, %v1012
        %v1049 = vpack.c.b16 %v1017, %v1015
        %v1050 = vpack.c.b16 %v1018, %v1016
        %1083 = vmatprep.subr.bf16.mxu0 %v1020
        %1084 = vmatpush1.bf16.msra.mxu0 %v1019
        %1085 = vmatprep.subr.bf16.mxu0 %v1022
        %1086 = vmatpush1.bf16.msra.mxu0 %v1021
        %1087 = vmatprep.subr.bf16.mxu0 %v1024
        %1088 = vmatpush1.bf16.msra.mxu0 %v1023
        %1089 = vmatprep.subr.bf16.mxu0 %v1026
        %1090 = vmatpush1.bf16.msra.mxu0 %v1025
        %1091 = vmatprep.subr.bf16.mxu0 %v1028
        %1092 = vmatpush1.bf16.msra.mxu0 %v1027
        %1093 = vmatprep.subr.bf16.mxu0 %v1030
        %1094 = vmatpush1.bf16.msra.mxu0 %v1029
        %1095 = vmatprep.subr.bf16.mxu0 %v1032
        %1096 = vmatpush1.bf16.msra.mxu0 %v1031
        %1097 = vmatprep.subr.bf16.mxu0 %v1034
        %1098 = vmatpush1.bf16.msra.mxu0 %v1033
        %1099 = vmatprep.subr.bf16.mxu0 %v1036
        %1100 = vmatpush1.bf16.msra.mxu0 %v1035
        %1101 = vmatprep.subr.bf16.mxu0 %v1038
        %1102 = vmatpush1.bf16.msra.mxu0 %v1037
        %1103 = vmatprep.subr.bf16.mxu0 %v1040
        %1104 = vmatpush1.bf16.msra.mxu0 %v1039
        %1105 = vmatprep.subr.bf16.mxu0 %v1042
        %1106 = vmatpush1.bf16.msra.mxu0 %v1041
        %1107 = vmatprep.subr.bf16.mxu0 %v1044
        %1108 = vmatpush1.bf16.msra.mxu0 %v1043
        %1109 = vmatprep.subr.bf16.mxu0 %v1046
        %1110 = vmatpush1.bf16.msra.mxu0 %v1045
        %1111 = vmatprep.subr.bf16.mxu0 %v1048
        %1112 = vmatpush1.bf16.msra.mxu0 %v1047
        %1113 = vmatprep.subr.bf16.mxu0 %v1050
        %1114 = vmatpush1.bf16.msra.mxu0 %v1049
        %1115 = vmatprep.mubr.bf16.mxu0 %v625
        %1116 = vmatmul.mubr.bf16.gmra.mrb[0].mxu0 %v624
        %v1117 = vpop.f32.mrb[0].mxu0
        %v1118 = vadd.f32 %v915, %v1117
        %v1119 = vpop.f32.mrb[0].mxu0
        %v1120 = vadd.f32 %v917, %v1119
        %v1121 = vpop.f32.mrb[0].mxu0
        %v1122 = vadd.f32 %v919, %v1121
        %v1123 = vpop.f32.mrb[0].mxu0
        %v1124 = vadd.f32 %v921, %v1123
        %1125 = vdwg.mxu0
        %s1126 = scalar_lea.vmem [#allocation7], 512
        %v1127 = vld [vmem:[%s1126] sm:$0xff]
        %v1128 = vld [vmem:[%s1126 + $0x8] sm:$0xff]
        %v1129 = vld [vmem:[%s1126 + $0x10] sm:$0xff]
        %v1130 = vld [vmem:[%s1126 + $0x18] sm:$0xff]
        %v1131 = vld [vmem:[%s1126 + $0x20] sm:$0xff]
        %v1132 = vld [vmem:[%s1126 + $0x28] sm:$0xff]
        %v1133 = vld [vmem:[%s1126 + $0x30] sm:$0xff]
        %v1134 = vld [vmem:[%s1126 + $0x38] sm:$0xff]
        %v1135 = vld [vmem:[%s1126 + $0x40] sm:$0xff]
        %v1136 = vld [vmem:[%s1126 + $0x48] sm:$0xff]
        %v1137 = vld [vmem:[%s1126 + $0x50] sm:$0xff]
        %v1138 = vld [vmem:[%s1126 + $0x58] sm:$0xff]
        %v1139 = vld [vmem:[%s1126 + $0x60] sm:$0xff]
        %v1140 = vld [vmem:[%s1126 + $0x68] sm:$0xff]
        %v1141 = vld [vmem:[%s1126 + $0x70] sm:$0xff]
        %v1142 = vld [vmem:[%s1126 + $0x78] sm:$0xff]
        %v1143 = vld [vmem:[%s1126 + $0x80] sm:$0xff]
        %v1144 = vld [vmem:[%s1126 + $0x88] sm:$0xff]
        %v1145 = vld [vmem:[%s1126 + $0x90] sm:$0xff]
        %v1146 = vld [vmem:[%s1126 + $0x98] sm:$0xff]
        %v1147 = vld [vmem:[%s1126 + $0xa0] sm:$0xff]
        %v1148 = vld [vmem:[%s1126 + $0xa8] sm:$0xff]
        %v1149 = vld [vmem:[%s1126 + $0xb0] sm:$0xff]
        %v1150 = vld [vmem:[%s1126 + $0xb8] sm:$0xff]
        %v1151 = vld [vmem:[%s1126 + $0xc0] sm:$0xff]
        %v1152 = vld [vmem:[%s1126 + $0xc8] sm:$0xff]
        %v1153 = vld [vmem:[%s1126 + $0xd0] sm:$0xff]
        %v1154 = vld [vmem:[%s1126 + $0xd8] sm:$0xff]
        %v1155 = vld [vmem:[%s1126 + $0xe0] sm:$0xff]
        %v1156 = vld [vmem:[%s1126 + $0xe8] sm:$0xff]
        %v1157 = vld [vmem:[%s1126 + $0xf0] sm:$0xff]
        %v1158 = vld [vmem:[%s1126 + $0xf8] sm:$0xff]
        %vm1163 = vcmask 1046528
        %v1164 = vrot.slane %v624, 1
        %v1165 = vrot.slane %v626, 1
        %v1166 = vsel %vm1163, %v1164, %v1165
        %v1167 = vrot.slane %v625, 1
        %v1168 = vrot.slane %v627, 1
        %v1169 = vsel %vm1163, %v1167, %v1168
        %v1204 = vunpack.c.l.b16 %v1127
        %v1205 = vunpack.c.h.b16 %v1127
        %v1206 = vunpack.c.l.b16 %v1128
        %v1207 = vunpack.c.h.b16 %v1128
        %v1208 = vunpack.c.l.b16 %v1129
        %v1209 = vunpack.c.h.b16 %v1129
        %v1210 = vunpack.c.l.b16 %v1130
        %v1211 = vunpack.c.h.b16 %v1130
        %v1212 = vunpack.c.l.b16 %v1131
        %v1213 = vunpack.c.h.b16 %v1131
        %v1214 = vunpack.c.l.b16 %v1132
        %v1215 = vunpack.c.h.b16 %v1132
        %v1216 = vunpack.c.l.b16 %v1133
        %v1217 = vunpack.c.h.b16 %v1133
        %v1218 = vunpack.c.l.b16 %v1134
        %v1219 = vunpack.c.h.b16 %v1134
        %v1220 = vunpack.c.l.b16 %v1135
        %v1221 = vunpack.c.h.b16 %v1135
        %v1222 = vunpack.c.l.b16 %v1136
        %v1223 = vunpack.c.h.b16 %v1136
        %v1224 = vunpack.c.l.b16 %v1137
        %v1225 = vunpack.c.h.b16 %v1137
        %v1226 = vunpack.c.l.b16 %v1138
        %v1227 = vunpack.c.h.b16 %v1138
        %v1228 = vunpack.c.l.b16 %v1139
        %v1229 = vunpack.c.h.b16 %v1139
        %v1230 = vunpack.c.l.b16 %v1140
        %v1231 = vunpack.c.h.b16 %v1140
        %v1232 = vunpack.c.l.b16 %v1141
        %v1233 = vunpack.c.h.b16 %v1141
        %v1234 = vunpack.c.l.b16 %v1142
        %v1235 = vunpack.c.h.b16 %v1142
        %v1236 = vunpack.c.l.b16 %v1143
        %v1237 = vunpack.c.h.b16 %v1143
        %v1238 = vunpack.c.l.b16 %v1144
        %v1239 = vunpack.c.h.b16 %v1144
        %v1240 = vunpack.c.l.b16 %v1145
        %v1241 = vunpack.c.h.b16 %v1145
        %v1242 = vunpack.c.l.b16 %v1146
        %v1243 = vunpack.c.h.b16 %v1146
        %v1244 = vunpack.c.l.b16 %v1147
        %v1245 = vunpack.c.h.b16 %v1147
        %v1246 = vunpack.c.l.b16 %v1148
        %v1247 = vunpack.c.h.b16 %v1148
        %v1248 = vunpack.c.l.b16 %v1149
        %v1249 = vunpack.c.h.b16 %v1149
        %v1250 = vunpack.c.l.b16 %v1150
        %v1251 = vunpack.c.h.b16 %v1150
        %v1252 = vunpack.c.l.b16 %v1151
        %v1253 = vunpack.c.h.b16 %v1151
        %v1254 = vunpack.c.l.b16 %v1152
        %v1255 = vunpack.c.h.b16 %v1152
        %v1256 = vunpack.c.l.b16 %v1153
        %v1257 = vunpack.c.h.b16 %v1153
        %v1258 = vunpack.c.l.b16 %v1154
        %v1259 = vunpack.c.h.b16 %v1154
        %v1260 = vunpack.c.l.b16 %v1155
        %v1261 = vunpack.c.h.b16 %v1155
        %v1262 = vunpack.c.l.b16 %v1156
        %v1263 = vunpack.c.h.b16 %v1156
        %v1264 = vunpack.c.l.b16 %v1157
        %v1265 = vunpack.c.h.b16 %v1157
        %v1266 = vunpack.c.l.b16 %v1158
        %v1267 = vunpack.c.h.b16 %v1158
        %v1268 = vpack.c.b16 %v1206, %v1204
        %v1269 = vpack.c.b16 %v1207, %v1205
        %v1270 = vpack.c.b16 %v1210, %v1208
        %v1271 = vpack.c.b16 %v1211, %v1209
        %v1272 = vpack.c.b16 %v1214, %v1212
        %v1273 = vpack.c.b16 %v1215, %v1213
        %v1274 = vpack.c.b16 %v1218, %v1216
        %v1275 = vpack.c.b16 %v1219, %v1217
        %v1276 = vpack.c.b16 %v1222, %v1220
        %v1277 = vpack.c.b16 %v1223, %v1221
        %v1278 = vpack.c.b16 %v1226, %v1224
        %v1279 = vpack.c.b16 %v1227, %v1225
        %v1280 = vpack.c.b16 %v1230, %v1228
        %v1281 = vpack.c.b16 %v1231, %v1229
        %v1282 = vpack.c.b16 %v1234, %v1232
        %v1283 = vpack.c.b16 %v1235, %v1233
        %v1284 = vpack.c.b16 %v1238, %v1236
        %v1285 = vpack.c.b16 %v1239, %v1237
        %v1286 = vpack.c.b16 %v1242, %v1240
        %v1287 = vpack.c.b16 %v1243, %v1241
        %v1288 = vpack.c.b16 %v1246, %v1244
        %v1289 = vpack.c.b16 %v1247, %v1245
        %v1290 = vpack.c.b16 %v1250, %v1248
        %v1291 = vpack.c.b16 %v1251, %v1249
        %v1292 = vpack.c.b16 %v1254, %v1252
        %v1293 = vpack.c.b16 %v1255, %v1253
        %v1294 = vpack.c.b16 %v1258, %v1256
        %v1295 = vpack.c.b16 %v1259, %v1257
        %v1296 = vpack.c.b16 %v1262, %v1260
        %v1297 = vpack.c.b16 %v1263, %v1261
        %v1298 = vpack.c.b16 %v1266, %v1264
        %v1299 = vpack.c.b16 %v1267, %v1265
        %1332 = vmatprep.subr.bf16.mxu0 %v1269
        %1333 = vmatpush1.bf16.msra.mxu0 %v1268
        %1334 = vmatprep.subr.bf16.mxu0 %v1271
        %1335 = vmatpush1.bf16.msra.mxu0 %v1270
        %1336 = vmatprep.subr.bf16.mxu0 %v1273
        %1337 = vmatpush1.bf16.msra.mxu0 %v1272
        %1338 = vmatprep.subr.bf16.mxu0 %v1275
        %1339 = vmatpush1.bf16.msra.mxu0 %v1274
        %1340 = vmatprep.subr.bf16.mxu0 %v1277
        %1341 = vmatpush1.bf16.msra.mxu0 %v1276
        %1342 = vmatprep.subr.bf16.mxu0 %v1279
        %1343 = vmatpush1.bf16.msra.mxu0 %v1278
        %1344 = vmatprep.subr.bf16.mxu0 %v1281
        %1345 = vmatpush1.bf16.msra.mxu0 %v1280
        %1346 = vmatprep.subr.bf16.mxu0 %v1283
        %1347 = vmatpush1.bf16.msra.mxu0 %v1282
        %1348 = vmatprep.subr.bf16.mxu0 %v1285
        %1349 = vmatpush1.bf16.msra.mxu0 %v1284
        %1350 = vmatprep.subr.bf16.mxu0 %v1287
        %1351 = vmatpush1.bf16.msra.mxu0 %v1286
        %1352 = vmatprep.subr.bf16.mxu0 %v1289
        %1353 = vmatpush1.bf16.msra.mxu0 %v1288
        %1354 = vmatprep.subr.bf16.mxu0 %v1291
        %1355 = vmatpush1.bf16.msra.mxu0 %v1290
        %1356 = vmatprep.subr.bf16.mxu0 %v1293
        %1357 = vmatpush1.bf16.msra.mxu0 %v1292
        %1358 = vmatprep.subr.bf16.mxu0 %v1295
        %1359 = vmatpush1.bf16.msra.mxu0 %v1294
        %1360 = vmatprep.subr.bf16.mxu0 %v1297
        %1361 = vmatpush1.bf16.msra.mxu0 %v1296
        %1362 = vmatprep.subr.bf16.mxu0 %v1299
        %1363 = vmatpush1.bf16.msra.mxu0 %v1298
        %1364 = vmatprep.mubr.bf16.mxu0 %v1169
        %1365 = vmatmul.mubr.bf16.gmra.mrb[0].mxu0 %v1166
        %v1366 = vpop.f32.mrb[0].mxu0
        %v1367 = vadd.f32 0.0, %v1366
        %v1368 = vpop.f32.mrb[0].mxu0
        %v1369 = vadd.f32 0.0, %v1368
        %v1370 = vpop.f32.mrb[0].mxu0
        %v1371 = vadd.f32 0.0, %v1370
        %v1372 = vpop.f32.mrb[0].mxu0
        %v1373 = vadd.f32 0.0, %v1372
        %1374 = vdwg.mxu0
        %v1375 = vadd.f32 %v1118, %v1367
        %v1376 = vadd.f32 %v1120, %v1369
        %v1377 = vadd.f32 %v1122, %v1371
        %v1378 = vadd.f32 %v1124, %v1373
        %v1379 = vld [vmem:[%s5] sm:$0x3]
        %v1381 = vlaneseq
        %v1382 = vshrl.u32 %v1381, 7
        %v1383 = vsub.s32 0, %v1382
        %v1384 = vrot.slane %v1379, %v1383
        %v1385 = vlaneseq
        %v1386 = vshrl.u32 %v1385, 7
        %v1387 = vsub.s32 1, %v1386
        %v1388 = vrot.slane %v1379, %v1387
        %v1391 = vmul.f32 %v1375, %v1384
        %v1392 = vmul.f32 %v1376, %v1388
        %v1393 = vmul.f32 %v1377, %v1384
        %v1394 = vmul.f32 %v1378, %v1388
        %v1395 = vld [vmem:[%s6] sm:$0x3]
        %v1397 = vlaneseq
        %v1398 = vshrl.u32 %v1397, 7
        %v1399 = vsub.s32 0, %v1398
        %v1400 = vrot.slane %v1395, %v1399
        %v1401 = vlaneseq
        %v1402 = vshrl.u32 %v1401, 7
        %v1403 = vsub.s32 1, %v1402
        %v1404 = vrot.slane %v1395, %v1403
        %v1407 = vadd.f32 %v1391, %v1400
        %v1408 = vadd.f32 %v1392, %v1404
        %v1409 = vadd.f32 %v1393, %v1400
        %v1410 = vadd.f32 %v1394, %v1404
        %v1411 = vmax.f32 %v1407, 0.0
        %v1412 = vmax.f32 %v1408, 0.0
        %v1413 = vmax.f32 %v1409, 0.0
        %v1414 = vmax.f32 %v1410, 0.0
        %v1415 = vpack.c.bf16 %v1413, %v1411
        %v1416 = vpack.c.bf16 %v1414, %v1412
        %v1417 = vld [vmem:[#allocation8] sm:$0xf]
        %v1418 = vld [vmem:[#allocation8 + $0x4] sm:$0xf]
        %v1419 = vld [vmem:[#allocation8 + $0x8] sm:$0xf]
        %v1420 = vld [vmem:[#allocation8 + $0xc] sm:$0xf]
        %v1421 = vld [vmem:[#allocation8 + $0x10] sm:$0xf]
        %v1422 = vld [vmem:[#allocation8 + $0x14] sm:$0xf]
        %v1423 = vld [vmem:[#allocation8 + $0x18] sm:$0xf]
        %v1424 = vld [vmem:[#allocation8 + $0x1c] sm:$0xf]
        %v1425 = vld [vmem:[#allocation8 + $0x20] sm:$0xf]
        %v1426 = vld [vmem:[#allocation8 + $0x24] sm:$0xf]
        %v1427 = vld [vmem:[#allocation8 + $0x28] sm:$0xf]
        %v1428 = vld [vmem:[#allocation8 + $0x2c] sm:$0xf]
        %v1429 = vld [vmem:[#allocation8 + $0x30] sm:$0xf]
        %v1430 = vld [vmem:[#allocation8 + $0x34] sm:$0xf]
        %v1431 = vld [vmem:[#allocation8 + $0x38] sm:$0xf]
        %v1432 = vld [vmem:[#allocation8 + $0x3c] sm:$0xf]
        %v1433 = vld [vmem:[#allocation8 + $0x40] sm:$0xf]
        %v1434 = vld [vmem:[#allocation8 + $0x44] sm:$0xf]
        %v1435 = vld [vmem:[#allocation8 + $0x48] sm:$0xf]
        %v1436 = vld [vmem:[#allocation8 + $0x4c] sm:$0xf]
        %v1437 = vld [vmem:[#allocation8 + $0x50] sm:$0xf]
        %v1438 = vld [vmem:[#allocation8 + $0x54] sm:$0xf]
        %v1439 = vld [vmem:[#allocation8 + $0x58] sm:$0xf]
        %v1440 = vld [vmem:[#allocation8 + $0x5c] sm:$0xf]
        %v1441 = vld [vmem:[#allocation8 + $0x60] sm:$0xf]
        %v1442 = vld [vmem:[#allocation8 + $0x64] sm:$0xf]
        %v1443 = vld [vmem:[#allocation8 + $0x68] sm:$0xf]
        %v1444 = vld [vmem:[#allocation8 + $0x6c] sm:$0xf]
        %v1445 = vld [vmem:[#allocation8 + $0x70] sm:$0xf]
        %v1446 = vld [vmem:[#allocation8 + $0x74] sm:$0xf]
        %v1447 = vld [vmem:[#allocation8 + $0x78] sm:$0xf]
        %v1448 = vld [vmem:[#allocation8 + $0x7c] sm:$0xf]
        %v1481 = vunpack.c.l.b16 %v1417
        %v1482 = vunpack.c.l.b16 %v1418
        %v1483 = vunpack.c.l.b16 %v1419
        %v1484 = vunpack.c.l.b16 %v1420
        %v1485 = vunpack.c.l.b16 %v1421
        %v1486 = vunpack.c.l.b16 %v1422
        %v1487 = vunpack.c.l.b16 %v1423
        %v1488 = vunpack.c.l.b16 %v1424
        %v1489 = vunpack.c.l.b16 %v1425
        %v1490 = vunpack.c.l.b16 %v1426
        %v1491 = vunpack.c.l.b16 %v1427
        %v1492 = vunpack.c.l.b16 %v1428
        %v1493 = vunpack.c.l.b16 %v1429
        %v1494 = vunpack.c.l.b16 %v1430
        %v1495 = vunpack.c.l.b16 %v1431
        %v1496 = vunpack.c.l.b16 %v1432
        %v1497 = vunpack.c.l.b16 %v1433
        %v1498 = vunpack.c.l.b16 %v1434
        %v1499 = vunpack.c.l.b16 %v1435
        %v1500 = vunpack.c.l.b16 %v1436
        %v1501 = vunpack.c.l.b16 %v1437
        %v1502 = vunpack.c.l.b16 %v1438
        %v1503 = vunpack.c.l.b16 %v1439
        %v1504 = vunpack.c.l.b16 %v1440
        %v1505 = vunpack.c.l.b16 %v1441
        %v1506 = vunpack.c.l.b16 %v1442
        %v1507 = vunpack.c.l.b16 %v1443
        %v1508 = vunpack.c.l.b16 %v1444
        %v1509 = vunpack.c.l.b16 %v1445
        %v1510 = vunpack.c.l.b16 %v1446
        %v1511 = vunpack.c.l.b16 %v1447
        %v1512 = vunpack.c.l.b16 %v1448
        %v1513 = vpack.c.b16 %v1482, %v1481
        %v1514 = vpack.c.b16 %v1484, %v1483
        %v1515 = vpack.c.b16 %v1486, %v1485
        %v1516 = vpack.c.b16 %v1488, %v1487
        %v1517 = vpack.c.b16 %v1490, %v1489
        %v1518 = vpack.c.b16 %v1492, %v1491
        %v1519 = vpack.c.b16 %v1494, %v1493
        %v1520 = vpack.c.b16 %v1496, %v1495
        %v1521 = vpack.c.b16 %v1498, %v1497
        %v1522 = vpack.c.b16 %v1500, %v1499
        %v1523 = vpack.c.b16 %v1502, %v1501
        %v1524 = vpack.c.b16 %v1504, %v1503
        %v1525 = vpack.c.b16 %v1506, %v1505
        %v1526 = vpack.c.b16 %v1508, %v1507
        %v1527 = vpack.c.b16 %v1510, %v1509
        %v1528 = vpack.c.b16 %v1512, %v1511
        %1545 = vmatprep.subr.bf16.mxu0 0
        %1546 = vmatpush1.bf16.msra.mxu0 %v1513
        %1547 = vmatprep.subr.bf16.mxu0 0
        %1548 = vmatpush1.bf16.msra.mxu0 %v1514
        %1549 = vmatprep.subr.bf16.mxu0 0
        %1550 = vmatpush1.bf16.msra.mxu0 %v1515
        %1551 = vmatprep.subr.bf16.mxu0 0
        %1552 = vmatpush1.bf16.msra.mxu0 %v1516
        %1553 = vmatprep.subr.bf16.mxu0 0
        %1554 = vmatpush1.bf16.msra.mxu0 %v1517
        %1555 = vmatprep.subr.bf16.mxu0 0
        %1556 = vmatpush1.bf16.msra.mxu0 %v1518
        %1557 = vmatprep.subr.bf16.mxu0 0
        %1558 = vmatpush1.bf16.msra.mxu0 %v1519
        %1559 = vmatprep.subr.bf16.mxu0 0
        %1560 = vmatpush1.bf16.msra.mxu0 %v1520
        %1561 = vmatprep.subr.bf16.mxu0 0
        %1562 = vmatpush1.bf16.msra.mxu0 %v1521
        %1563 = vmatprep.subr.bf16.mxu0 0
        %1564 = vmatpush1.bf16.msra.mxu0 %v1522
        %1565 = vmatprep.subr.bf16.mxu0 0
        %1566 = vmatpush1.bf16.msra.mxu0 %v1523
        %1567 = vmatprep.subr.bf16.mxu0 0
        %1568 = vmatpush1.bf16.msra.mxu0 %v1524
        %1569 = vmatprep.subr.bf16.mxu0 0
        %1570 = vmatpush1.bf16.msra.mxu0 %v1525
        %1571 = vmatprep.subr.bf16.mxu0 0
        %1572 = vmatpush1.bf16.msra.mxu0 %v1526
        %1573 = vmatprep.subr.bf16.mxu0 0
        %1574 = vmatpush1.bf16.msra.mxu0 %v1527
        %1575 = vmatprep.subr.bf16.mxu0 0
        %1576 = vmatpush1.bf16.msra.mxu0 %v1528
        %1577 = vmatprep.mubr.bf16.mxu0 %v1416
        %1578 = vmatmul.mubr.bf16.gmra.mrb[0].mxu0 %v1415
        %v1579 = vpop.f32.mrb[0].mxu0
        %v1580 = vadd.f32 0.0, %v1579
        %v1581 = vpop.f32.mrb[0].mxu0
        %v1582 = vpop.f32.mrb[0].mxu0
        %v1583 = vadd.f32 0.0, %v1582
        %v1584 = vpop.f32.mrb[0].mxu0
        %1585 = vdwg.mxu0
        %v1586 = vld [vmem:[%s8] sm:$0x1]
        %v1588 = vlaneseq
        %v1589 = vshrl.u32 %v1588, 7
        %v1590 = vsub.s32 0, %v1589
        %v1591 = vrot.slane %v1586, %v1590
        %v1593 = vmul.f32 %v1580, %v1591
        %v1594 = vmul.f32 %v1583, %v1591
        %v1595 = vld [vmem:[%s9] sm:$0x1]
        %v1597 = vlaneseq
        %v1598 = vshrl.u32 %v1597, 7
        %v1599 = vsub.s32 0, %v1598
        %v1600 = vrot.slane %v1595, %v1599
        %v1602 = vadd.f32 %v1593, %v1600
        %v1603 = vadd.f32 %v1594, %v1600
        %v1604 = vadd.f32 %v423, %v1602
        %v1605 = vadd.f32 %v424, %v1603
        %v1606 = vmax.f32 %v1604, 0.0
        %v1607 = vmax.f32 %v1605, 0.0
        %1608 = vst [vmem:[%s421] sm:$0xff] %v1606
        %1609 = vst [vmem:[%s421 + $0x8] sm:$0xff] %v1607
        %s1610 = sand.u32 %s252, 1
        %s1611 = scalar_lea.sflag [#allocation4], %s1610
        %s1612 = sand.u32 %s252, 1
        %s1613 = smul.addr %s1612, 16
        %s1614 = scalar_lea.vmem [#allocation10], %s1613
        // Predicated region
        $region77: #{tpu_custom_call.1} parent=59 // pred_check
          %p1615 = pneg %p262
        $region78: #{tpu_custom_call.1} parent=59 // pred_check_branch
          %1617 = sbr.rel (%p1615) target = $region80
        $region79: #{tpu_custom_call.1} parent=59 // pred_region
          %s1619 = ssub.s32 256, 256
          %1620 = vsyncadd %s1611, %s1619
          %s1621 = smul.addr %s29, 2
          %s1622 = smul.addr %s1621, 128
          %s1623 = scalar_lea.hbm %s10, %s1622
          %s1624 = sshll.u32 %s1614, 4
          %s1625 = int_to_ptr.vmem [resolvable:$true] %s1624
          %1630 = dma.vmem_to_hbm [thread:$0]  %s1625, 256, %s1623, %s1611, 128, 128, 8
        $region80: #{tpu_custom_call.1} parent=59 // pred_fallthru
          _
      $region60: #{tpu_custom_call.1} parent=5 // pred_fallthru
        _
      %p1631 = scmp.le.s32.totalorder 2, %s24
      // Predicated region
      $region81: #{tpu_custom_call.1} parent=5 // pred_check
        %p1632 = pneg %p1631
      $region82: #{tpu_custom_call.1} parent=5 // pred_check_branch
        %1634 = sbr.rel (%p1632) target = $region84
      $region83: #{tpu_custom_call.1} parent=5 // pred_region
        %s1635 = ssub.s32 %s24, 2
        // Predicated region
        $region85: #{tpu_custom_call.1} parent=83 // pred_check
          %p1636 = pneg %p268
        $region86: #{tpu_custom_call.1} parent=83 // pred_check_branch
          %1638 = sbr.rel (%p1636) target = $region88
        $region87: #{tpu_custom_call.1} parent=83 // pred_region
          %s1639 = sand.u32 %s253, 1
          %s1640 = scalar_lea.sflag [#allocation4], %s1639
          %s1641 = sand.u32 %s253, 1
          %s1642 = smul.addr %s1641, 16
          %s1643 = scalar_lea.vmem [#allocation10], %s1642
          %1644 = dma.done %s1640, 256
        $region88: #{tpu_custom_call.1} parent=83 // pred_fallthru
          _
      $region84: #{tpu_custom_call.1} parent=5 // pred_fallthru
        _
    $region6: #{tpu_custom_call.1} parent=1 // loop_footer
      %s28 = sadd.s32 1, %s24
    $region7: #{tpu_custom_call.1} parent=1 // loop_footer_branch
      %23 = sbr.rel target = $region3
    $region8: #{tpu_custom_call.1} parent=1 // loop_exit
      _
    %1645 = vsyncpa [#allocation3], 1
    %s1646 = scalar_lea.sflag [#allocation3], 1
    %1647 = vsyncpa %s1646, 1
    %1648 = vsyncpa [#allocation6], 1
    %1649 = vsyncpa [#allocation9], 1
    %1650 = vsyncpa [#allocation4], 1
    %s1651 = scalar_lea.sflag [#allocation4], 1
    %1652 = vsyncpa %s1651, 1

</llo_original>
